<compile_context>
chip_gen: v7x
topology: tpu7x:2x2x1
jax: 0.10.0
libtpu: 0.0.40
codegen_flags: <defaults>
</compile_context>

<pallas_src>
import jax
import jax.numpy as jnp
import numpy as np
from jax.experimental import pallas as pl
from jax.experimental.pallas import tpu as pltpu

# -----------------------------------------------------------------------------
# Synthetic descriptor, defined in-script (deterministic, no checkpoint load):
# 3 operands (x0, x1, output), uniform extent U, scalar coefficients.
# -----------------------------------------------------------------------------
U = 128                      # mode extent (lane aligned)
NUM_SEGMENTS = (2, 3, 4)     # segments per operand; last operand = output
PATHS = (                    # ((seg_op0, seg_op1, seg_out), coeff)
    ((0, 0, 0), 1.0),
    ((1, 1, 1), 0.5),
    ((0, 2, 2), -1.0),
    ((1, 0, 3), 2.0),
    ((0, 1, 0), 0.3),
    ((1, 2, 3), -0.7),
)
MATH_DTYPE = jnp.float32

# Static grouping of paths by output segment (done once at build time).
_PATHS_BY_OUT = tuple(
    tuple(((s0, s1), c) for (s0, s1, so), c in PATHS if so == out_seg)
    for out_seg in range(NUM_SEGMENTS[2])
)


def _tp3_kernel(x0_ref, x1_ref, out_ref):
    """x0_ref: (b0, seg0*U), x1_ref: (b1, seg1*U) with b* in {1, TZ};
    out_ref: (TZ, sego*U).  Paths are static -> fully unrolled VPU code."""
    tz = out_ref.shape[0]

    def seg(ref, cache, s):
        # Load one (rows, U) segment straight from the ref (no whole-block
        # materialization), cast to math dtype, sublane-broadcast batch-1
        # operands.  Cached so converts/broadcasts happen once per group.
        if s not in cache:
            v = ref[:, s * U:(s + 1) * U].astype(MATH_DTYPE)
            if v.shape[0] != tz:                     # (1, dim) broadcast operand
                v = jnp.broadcast_to(v, (tz, U))
            cache[s] = v
        return cache[s]

    for so, paths in enumerate(_PATHS_BY_OUT):
        # Per-output-segment caches keep the live set small -> the compiler
        # streams (8,128) chunks instead of spilling big VMEM temporaries.
        a_cache, b_cache = {}, {}
        acc = None
        for (s0, s1), coeff in paths:
            term = seg(x0_ref, a_cache, s0) * seg(x1_ref, b_cache, s1)
            if coeff != 1.0:
                term = term * jnp.asarray(coeff, dtype=MATH_DTYPE)
            acc = term if acc is None else acc + term
        if acc is None:
            # Output segment with no paths must still be defined (zero).
            out_ref[:, so * U:(so + 1) * U] = jnp.zeros((tz, U), out_ref.dtype)
        else:
            out_ref[:, so * U:(so + 1) * U] = acc.astype(out_ref.dtype)


def fused_tensor_product_op3(x0, x1, perm=(0, 1), *, tz=1024):
    """Mirrors FusedTensorProductOp3.forward(x0, x1)."""
    # Input permutation (torch.fx _permutation_module equivalent).
    inputs = (x0, x1)
    x0, x1 = inputs[perm[0]], inputs[perm[1]]

    assert x0.ndim == 2 and x1.ndim == 2, "input should be (batch, dim) or (1, dim)"
    seg0, seg1, sego = NUM_SEGMENTS
    assert x0.shape[1] == seg0 * U
    assert x1.shape[1] == seg1 * U

    Z = max(x0.shape[0], x1.shape[0])
    assert x0.shape[0] in (1, Z) and x1.shape[0] in (1, Z)

    # Batch tile: big enough to amortize per-step overhead, full-extent if the
    # batch is small (then the block equals the array dims -> always legal).
    TZ = Z if Z <= tz else tz
    grid = (pl.cdiv(Z, TZ),)

    out_dtype = jnp.result_type(x0.dtype, x1.dtype)
    out_dim = sego * U

    def in_spec(x):
        dim = x.shape[1]
        if x.shape[0] == 1:          # broadcast operand: same block every step
            return pl.BlockSpec((1, dim), lambda i: (0, 0))
        return pl.BlockSpec((TZ, dim), lambda i: (i, 0))

    # Explicit VMEM budget (double-buffered input/output blocks + slack); the
    # floor keeps us at/above v6e defaults, the cap respects v7x's 64 MiB/TC.
    rows0 = 1 if x0.shape[0] == 1 else TZ
    rows1 = 1 if x1.shape[0] == 1 else TZ
    block_bytes = (rows0 * x0.shape[1] * jnp.dtype(x0.dtype).itemsize
                   + rows1 * x1.shape[1] * jnp.dtype(x1.dtype).itemsize
                   + TZ * out_dim * jnp.dtype(out_dtype).itemsize)
    vmem_limit = int(min(max(2.5 * block_bytes + (2 << 20), 32 << 20), 64 << 20))

    # Advisory cost: memory-bound custom call.
    flops = 2 * len(PATHS) * U * Z
    bytes_accessed = (x0.size * jnp.dtype(x0.dtype).itemsize
                      + x1.size * jnp.dtype(x1.dtype).itemsize
                      + Z * out_dim * jnp.dtype(out_dtype).itemsize)

    out = pl.pallas_call(
        _tp3_kernel,
        out_shape=jax.ShapeDtypeStruct((Z, out_dim), out_dtype),
        grid_spec=pltpu.PrefetchScalarGridSpec(
            num_scalar_prefetch=0,
            grid=grid,
            in_specs=[in_spec(x0), in_spec(x1)],
            out_specs=pl.BlockSpec((TZ, out_dim), lambda i: (i, 0)),
        ),
        compiler_params=pltpu.CompilerParams(
            dimension_semantics=("parallel",),      # tiles are independent
            vmem_limit_bytes=vmem_limit),
        cost_estimate=pl.CostEstimate(
            flops=flops, transcendentals=0, bytes_accessed=bytes_accessed),
    )(x0, x1)
    return out


def tp3_reference(x0, x1, perm=(0, 1)):
    """Pure numpy reference of the same op."""
    inputs = (np.asarray(x0), np.asarray(x1))
    x0, x1 = inputs[perm[0]], inputs[perm[1]]
    Z = max(x0.shape[0], x1.shape[0])
    sego = NUM_SEGMENTS[2]
    out = np.zeros((Z, sego * U), np.float32)
    for (s0, s1, so), coeff in PATHS:
        a = x0[:, s0 * U:(s0 + 1) * U]
        b = x1[:, s1 * U:(s1 + 1) * U]
        out[:, so * U:(so + 1) * U] += coeff * (a * b)
    return out


if __name__ == "__main__":
    key = jax.random.PRNGKey(0)
    k0, k1, k2, k3 = jax.random.split(key, 4)
    seg0, seg1, sego = NUM_SEGMENTS

    # Test 1: full-batch inputs (single full-extent tile at the default TZ).
    Z = 512
    x0 = jax.random.normal(k0, (Z, seg0 * U), jnp.float32)
    x1 = jax.random.normal(k1, (Z, seg1 * U), jnp.float32)
    out = jax.block_until_ready(fused_tensor_product_op3(x0, x1))
    np.testing.assert_allclose(np.asarray(out), tp3_reference(x0, x1),
                               rtol=1e-5, atol=1e-5)

    # Test 2: broadcast second operand (1, dim), multi-step grid with a ragged
    # last block (Z=300, tz=128 -> 3 grid steps, last one partial).
    Z2 = 300
    x0b = jax.random.normal(k2, (Z2, seg0 * U), jnp.float32)
    x1b = jax.random.normal(k3, (1, seg1 * U), jnp.float32)
    out2 = jax.block_until_ready(fused_tensor_product_op3(x0b, x1b, tz=128))
    np.testing.assert_allclose(np.asarray(out2), tp3_reference(x0b, x1b),
                               rtol=1e-5, atol=1e-5)

    print("KERNEL_OK")
</pallas_src>

<mosaic_0001>
module attributes {stable_mosaic.version = 11 : i64} {
  func.func @_tp3_kernel(%arg0: i32, %arg1: memref<512x256xf32, #tpu.memory_space<vmem>>, %arg2: memref<512x384xf32, #tpu.memory_space<vmem>>, %arg3: memref<512x512xf32, #tpu.memory_space<vmem>>) attributes {dimension_semantics = [#tpu.dimension_semantics<parallel>], iteration_bounds = array<i64: 1>, scalar_prefetch = 0 : i64, scratch_operands = 0 : i64, tpu.core_type = #tpu.core_type<tc>, window_params = [{transform_indices = @transform_0, window_bounds = array<i64: 512, 256>}, {transform_indices = @transform_1, window_bounds = array<i64: 512, 384>}, {transform_indices = @transform_2, window_bounds = array<i64: 512, 512>}]} {
    %c0 = arith.constant 0 : index
    %c0_0 = arith.constant 0 : index
    %0 = vector.load %arg1[%c0, %c0_0] : memref<512x256xf32, #tpu.memory_space<vmem>>, vector<512x128xf32>
    %c0_1 = arith.constant 0 : index
    %c0_2 = arith.constant 0 : index
    %1 = vector.load %arg2[%c0_1, %c0_2] : memref<512x384xf32, #tpu.memory_space<vmem>>, vector<512x128xf32>
    %2 = arith.mulf %0, %1 : vector<512x128xf32>
    %c0_3 = arith.constant 0 : index
    %c128 = arith.constant 128 : index
    %3 = vector.load %arg2[%c0_3, %c128] : memref<512x384xf32, #tpu.memory_space<vmem>>, vector<512x128xf32>
    %4 = arith.mulf %0, %3 : vector<512x128xf32>
    %cst = arith.constant 3.000000e-01 : f32
    %5 = vector.broadcast %cst : f32 to vector<512x128xf32>
    %6 = arith.mulf %4, %5 : vector<512x128xf32>
    %7 = arith.addf %2, %6 : vector<512x128xf32>
    %c0_4 = arith.constant 0 : index
    %c0_5 = arith.constant 0 : index
    %8 = vector.load %arg3[%c0_4, %c0_5] : memref<512x512xf32, #tpu.memory_space<vmem>>, vector<512x128xf32>
    tpu.vector_store %arg3[%c0_4, %c0_5], %7 {strides = array<i32>} : memref<512x512xf32, #tpu.memory_space<vmem>>, vector<512x128xf32>,
    %c0_6 = arith.constant 0 : index
    %c128_7 = arith.constant 128 : index
    %9 = vector.load %arg1[%c0_6, %c128_7] : memref<512x256xf32, #tpu.memory_space<vmem>>, vector<512x128xf32>
    %c0_8 = arith.constant 0 : index
    %c128_9 = arith.constant 128 : index
    %10 = vector.load %arg2[%c0_8, %c128_9] : memref<512x384xf32, #tpu.memory_space<vmem>>, vector<512x128xf32>
    %11 = arith.mulf %9, %10 : vector<512x128xf32>
    %cst_10 = arith.constant 5.000000e-01 : f32
    %12 = vector.broadcast %cst_10 : f32 to vector<512x128xf32>
    %13 = arith.mulf %11, %12 : vector<512x128xf32>
    %c0_11 = arith.constant 0 : index
    %c128_12 = arith.constant 128 : index
    %14 = vector.load %arg3[%c0_11, %c128_12] : memref<512x512xf32, #tpu.memory_space<vmem>>, vector<512x128xf32>
    tpu.vector_store %arg3[%c0_11, %c128_12], %13 {strides = array<i32>} : memref<512x512xf32, #tpu.memory_space<vmem>>, vector<512x128xf32>,
    %c0_13 = arith.constant 0 : index
    %c0_14 = arith.constant 0 : index
    %15 = vector.load %arg1[%c0_13, %c0_14] : memref<512x256xf32, #tpu.memory_space<vmem>>, vector<512x128xf32>
    %c0_15 = arith.constant 0 : index
    %c256 = arith.constant 256 : index
    %16 = vector.load %arg2[%c0_15, %c256] : memref<512x384xf32, #tpu.memory_space<vmem>>, vector<512x128xf32>
    %17 = arith.mulf %15, %16 : vector<512x128xf32>
    %cst_16 = arith.constant -1.000000e+00 : f32
    %18 = vector.broadcast %cst_16 : f32 to vector<512x128xf32>
    %19 = arith.mulf %17, %18 : vector<512x128xf32>
    %c0_17 = arith.constant 0 : index
    %c256_18 = arith.constant 256 : index
    %20 = vector.load %arg3[%c0_17, %c256_18] : memref<512x512xf32, #tpu.memory_space<vmem>>, vector<512x128xf32>
    tpu.vector_store %arg3[%c0_17, %c256_18], %19 {strides = array<i32>} : memref<512x512xf32, #tpu.memory_space<vmem>>, vector<512x128xf32>,
    %c0_19 = arith.constant 0 : index
    %c128_20 = arith.constant 128 : index
    %21 = vector.load %arg1[%c0_19, %c128_20] : memref<512x256xf32, #tpu.memory_space<vmem>>, vector<512x128xf32>
    %c0_21 = arith.constant 0 : index
    %c0_22 = arith.constant 0 : index
    %22 = vector.load %arg2[%c0_21, %c0_22] : memref<512x384xf32, #tpu.memory_space<vmem>>, vector<512x128xf32>
    %23 = arith.mulf %21, %22 : vector<512x128xf32>
    %cst_23 = arith.constant 2.000000e+00 : f32
    %24 = vector.broadcast %cst_23 : f32 to vector<512x128xf32>
    %25 = arith.mulf %23, %24 : vector<512x128xf32>
    %c0_24 = arith.constant 0 : index
    %c256_25 = arith.constant 256 : index
    %26 = vector.load %arg2[%c0_24, %c256_25] : memref<512x384xf32, #tpu.memory_space<vmem>>, vector<512x128xf32>
    %27 = arith.mulf %21, %26 : vector<512x128xf32>
    %cst_26 = arith.constant -0.699999988 : f32
    %28 = vector.broadcast %cst_26 : f32 to vector<512x128xf32>
    %29 = arith.mulf %27, %28 : vector<512x128xf32>
    %30 = arith.addf %25, %29 : vector<512x128xf32>
    %c0_27 = arith.constant 0 : index
    %c384 = arith.constant 384 : index
    %31 = vector.load %arg3[%c0_27, %c384] : memref<512x512xf32, #tpu.memory_space<vmem>>, vector<512x128xf32>
    tpu.vector_store %arg3[%c0_27, %c384], %30 {strides = array<i32>} : memref<512x512xf32, #tpu.memory_space<vmem>>, vector<512x128xf32>,
    return
  }
  func.func @transform_0(%arg0: i32) -> (i32, i32) {
    %c0_i32 = arith.constant 0 : i32
    %c0_i32_0 = arith.constant 0 : i32
    return %arg0, %c0_i32 : i32, i32
  }
  func.func @transform_1(%arg0: i32) -> (i32, i32) {
    %c0_i32 = arith.constant 0 : i32
    %c0_i32_0 = arith.constant 0 : i32
    return %arg0, %c0_i32 : i32, i32
  }
  func.func @transform_2(%arg0: i32) -> (i32, i32) {
    %c0_i32 = arith.constant 0 : i32
    %c0_i32_0 = arith.constant 0 : i32
    return %arg0, %c0_i32 : i32, i32
  }
}

</mosaic_0001>

<llo_original>
// kernel: tpu_custom_call.1
$region0: #{tpu_custom_call.1}
  #allocation0 [shape = 'u32[]', space=smem, size = 0x4, offset = 0x4, fixed_abs, tag = 'smem constant byte address 0x4 - core index']
  #allocation1 [shape = 'u32[144,128]{1,0:T(1,128)}', space=vmem, size = 0x12000, scoped, tag = 'internal scratch']
  %s0 = inlined_call_operand.hbm [shape: f32[512,256], index: 0, kind: input, shape index: {}]
  %s1 = inlined_call_operand.hbm [shape: f32[512,384], index: 1, kind: input, shape index: {}]
  %s2 = inlined_call_operand.hbm [shape: f32[512,512], index: 2, kind: output, shape index: {}]
  %s3 = sld [smem:[#allocation0]]
  $region26: #{tpu_custom_call.1} parent=0
    _
  %s5 = ssub.s32 1, %s3
  %s6 = scalar_select 0, %s5, %s3
  $region1: #{tpu_custom_call.1} parent=0
    #allocation2 [shape = 'u8[524288]{0}', space=vmem, size = 0x80000, scoped, tag = 'input window, operand 0, single buffered']
    #allocation3 [shape = 's32[1]{0}', space=sflag, size = 0x4, scoped, tag = 'scoped memory for tpu_custom_call.1']
    #allocation4 [shape = 's32[1]{0}', space=sflag, size = 0x4, scoped, tag = 'scoped memory for tpu_custom_call.1']
    #allocation5 [shape = 'u8[786432]{0}', space=vmem, size = 0xc0000, scoped, tag = 'input window, operand 1, single buffered']
    #allocation6 [shape = 's32[1]{0}', space=sflag, size = 0x4, scoped, tag = 'scoped memory for tpu_custom_call.1']
    #allocation7 [shape = 'u8[1048576]{0}', space=vmem, size = 0x100000, scoped, tag = 'output window, operand 0, single buffered']
    %7 = vsyncpa [#allocation3], 0
    %8 = vsyncpa [#allocation6], 0
    %9 = vsyncpa [#allocation4], 0
    // Predicated region
    $region2: #{tpu_custom_call.1} parent=1 // pred_check
      _
    $region3: #{tpu_custom_call.1} parent=1 // pred_check_branch
      %11 = sbr.rel (0) target = $region5
    $region4: #{tpu_custom_call.1} parent=1 // pred_region
      %s13 = ssub.s32 16384, 16384
      %14 = vsyncadd [#allocation3], %s13
      %s15 = sshll.u32 [#allocation2], 4
      %s16 = int_to_ptr.vmem [resolvable:$true] %s15
      %21 = dma.hbm_to_vmem [thread:$0]  %s0, 16384, %s16, [#allocation3], 256, 256, 16
    $region5: #{tpu_custom_call.1} parent=1 // pred_fallthru
      _
    // Predicated region
    $region6: #{tpu_custom_call.1} parent=1 // pred_check
      _
    $region7: #{tpu_custom_call.1} parent=1 // pred_check_branch
      %23 = sbr.rel (0) target = $region9
    $region8: #{tpu_custom_call.1} parent=1 // pred_region
      %s25 = ssub.s32 24576, 24576
      %26 = vsyncadd [#allocation6], %s25
      %s27 = sshll.u32 [#allocation5], 4
      %s28 = int_to_ptr.vmem [resolvable:$true] %s27
      %33 = dma.hbm_to_vmem [thread:$0]  %s1, 24576, %s28, [#allocation6], 384, 384, 24
    $region9: #{tpu_custom_call.1} parent=1 // pred_fallthru
      _
    // Predicated region
    $region10: #{tpu_custom_call.1} parent=1 // pred_check
      _
    $region11: #{tpu_custom_call.1} parent=1 // pred_check_branch
      %35 = sbr.rel (0) target = $region13
    $region12: #{tpu_custom_call.1} parent=1 // pred_region
      %36 = dma.done [#allocation3], 16384
    $region13: #{tpu_custom_call.1} parent=1 // pred_fallthru
      _
    // Predicated region
    $region14: #{tpu_custom_call.1} parent=1 // pred_check
      _
    $region15: #{tpu_custom_call.1} parent=1 // pred_check_branch
      %38 = sbr.rel (0) target = $region17
    $region16: #{tpu_custom_call.1} parent=1 // pred_region
      %39 = dma.done [#allocation6], 24576
    $region17: #{tpu_custom_call.1} parent=1 // pred_fallthru
      _
    %v40 = vld [vmem:[#allocation2] sm:$0xff]
    %v41 = vld [vmem:[#allocation2 + $0x10] sm:$0xff]
    %v42 = vld [vmem:[#allocation2 + $0x20] sm:$0xff]
    %v43 = vld [vmem:[#allocation2 + $0x30] sm:$0xff]
    %v44 = vld [vmem:[#allocation2 + $0x40] sm:$0xff]
    %v45 = vld [vmem:[#allocation2 + $0x50] sm:$0xff]
    %v46 = vld [vmem:[#allocation2 + $0x60] sm:$0xff]
    %v47 = vld [vmem:[#allocation2 + $0x70] sm:$0xff]
    %v48 = vld [vmem:[#allocation2 + $0x80] sm:$0xff]
    %v49 = vld [vmem:[#allocation2 + $0x90] sm:$0xff]
    %v50 = vld [vmem:[#allocation2 + $0xa0] sm:$0xff]
    %v51 = vld [vmem:[#allocation2 + $0xb0] sm:$0xff]
    %v52 = vld [vmem:[#allocation2 + $0xc0] sm:$0xff]
    %v53 = vld [vmem:[#allocation2 + $0xd0] sm:$0xff]
    %v54 = vld [vmem:[#allocation2 + $0xe0] sm:$0xff]
    %v55 = vld [vmem:[#allocation2 + $0xf0] sm:$0xff]
    %v56 = vld [vmem:[#allocation2 + $0x100] sm:$0xff]
    %v57 = vld [vmem:[#allocation2 + $0x110] sm:$0xff]
    %v58 = vld [vmem:[#allocation2 + $0x120] sm:$0xff]
    %v59 = vld [vmem:[#allocation2 + $0x130] sm:$0xff]
    %v60 = vld [vmem:[#allocation2 + $0x140] sm:$0xff]
    %v61 = vld [vmem:[#allocation2 + $0x150] sm:$0xff]
    %v62 = vld [vmem:[#allocation2 + $0x160] sm:$0xff]
    %v63 = vld [vmem:[#allocation2 + $0x170] sm:$0xff]
    %v64 = vld [vmem:[#allocation2 + $0x180] sm:$0xff]
    %v65 = vld [vmem:[#allocation2 + $0x190] sm:$0xff]
    %v66 = vld [vmem:[#allocation2 + $0x1a0] sm:$0xff]
    %v67 = vld [vmem:[#allocation2 + $0x1b0] sm:$0xff]
    %v68 = vld [vmem:[#allocation2 + $0x1c0] sm:$0xff]
    %v69 = vld [vmem:[#allocation2 + $0x1d0] sm:$0xff]
    %v70 = vld [vmem:[#allocation2 + $0x1e0] sm:$0xff]
    %v71 = vld [vmem:[#allocation2 + $0x1f0] sm:$0xff]
    %v72 = vld [vmem:[#allocation2 + $0x200] sm:$0xff]
    %v73 = vld [vmem:[#allocation2 + $0x210] sm:$0xff]
    %v74 = vld [vmem:[#allocation2 + $0x220] sm:$0xff]
    %v75 = vld [vmem:[#allocation2 + $0x230] sm:$0xff]
    %v76 = vld [vmem:[#allocation2 + $0x240] sm:$0xff]
    %v77 = vld [vmem:[#allocation2 + $0x250] sm:$0xff]
    %v78 = vld [vmem:[#allocation2 + $0x260] sm:$0xff]
    %v79 = vld [vmem:[#allocation2 + $0x270] sm:$0xff]
    %v80 = vld [vmem:[#allocation2 + $0x280] sm:$0xff]
    %v81 = vld [vmem:[#allocation2 + $0x290] sm:$0xff]
    %v82 = vld [vmem:[#allocation2 + $0x2a0] sm:$0xff]
    %v83 = vld [vmem:[#allocation2 + $0x2b0] sm:$0xff]
    %v84 = vld [vmem:[#allocation2 + $0x2c0] sm:$0xff]
    %v85 = vld [vmem:[#allocation2 + $0x2d0] sm:$0xff]
    %v86 = vld [vmem:[#allocation2 + $0x2e0] sm:$0xff]
    %v87 = vld [vmem:[#allocation2 + $0x2f0] sm:$0xff]
    %v88 = vld [vmem:[#allocation2 + $0x300] sm:$0xff]
    %v89 = vld [vmem:[#allocation2 + $0x310] sm:$0xff]
    %v90 = vld [vmem:[#allocation2 + $0x320] sm:$0xff]
    %v91 = vld [vmem:[#allocation2 + $0x330] sm:$0xff]
    %v92 = vld [vmem:[#allocation2 + $0x340] sm:$0xff]
    %v93 = vld [vmem:[#allocation2 + $0x350] sm:$0xff]
    %v94 = vld [vmem:[#allocation2 + $0x360] sm:$0xff]
    %v95 = vld [vmem:[#allocation2 + $0x370] sm:$0xff]
    %v96 = vld [vmem:[#allocation2 + $0x380] sm:$0xff]
    %v97 = vld [vmem:[#allocation2 + $0x390] sm:$0xff]
    %v98 = vld [vmem:[#allocation2 + $0x3a0] sm:$0xff]
    %v99 = vld [vmem:[#allocation2 + $0x3b0] sm:$0xff]
    %v100 = vld [vmem:[#allocation2 + $0x3c0] sm:$0xff]
    %v101 = vld [vmem:[#allocation2 + $0x3d0] sm:$0xff]
    %v102 = vld [vmem:[#allocation2 + $0x3e0] sm:$0xff]
    %v103 = vld [vmem:[#allocation2 + $0x3f0] sm:$0xff]
    %v104 = vld [vmem:[#allocation5] sm:$0xff]
    %v105 = vld [vmem:[#allocation5 + $0x18] sm:$0xff]
    %v106 = vld [vmem:[#allocation5 + $0x30] sm:$0xff]
    %v107 = vld [vmem:[#allocation5 + $0x48] sm:$0xff]
    %v108 = vld [vmem:[#allocation5 + $0x60] sm:$0xff]
    %v109 = vld [vmem:[#allocation5 + $0x78] sm:$0xff]
    %v110 = vld [vmem:[#allocation5 + $0x90] sm:$0xff]
    %v111 = vld [vmem:[#allocation5 + $0xa8] sm:$0xff]
    %v112 = vld [vmem:[#allocation5 + $0xc0] sm:$0xff]
    %v113 = vld [vmem:[#allocation5 + $0xd8] sm:$0xff]
    %v114 = vld [vmem:[#allocation5 + $0xf0] sm:$0xff]
    %v115 = vld [vmem:[#allocation5 + $0x108] sm:$0xff]
    %v116 = vld [vmem:[#allocation5 + $0x120] sm:$0xff]
    %v117 = vld [vmem:[#allocation5 + $0x138] sm:$0xff]
    %v118 = vld [vmem:[#allocation5 + $0x150] sm:$0xff]
    %v119 = vld [vmem:[#allocation5 + $0x168] sm:$0xff]
    %v120 = vld [vmem:[#allocation5 + $0x180] sm:$0xff]
    %v121 = vld [vmem:[#allocation5 + $0x198] sm:$0xff]
    %v122 = vld [vmem:[#allocation5 + $0x1b0] sm:$0xff]
    %v123 = vld [vmem:[#allocation5 + $0x1c8] sm:$0xff]
    %v124 = vld [vmem:[#allocation5 + $0x1e0] sm:$0xff]
    %v125 = vld [vmem:[#allocation5 + $0x1f8] sm:$0xff]
    %v126 = vld [vmem:[#allocation5 + $0x210] sm:$0xff]
    %v127 = vld [vmem:[#allocation5 + $0x228] sm:$0xff]
    %v128 = vld [vmem:[#allocation5 + $0x240] sm:$0xff]
    %v129 = vld [vmem:[#allocation5 + $0x258] sm:$0xff]
    %v130 = vld [vmem:[#allocation5 + $0x270] sm:$0xff]
    %v131 = vld [vmem:[#allocation5 + $0x288] sm:$0xff]
    %v132 = vld [vmem:[#allocation5 + $0x2a0] sm:$0xff]
    %v133 = vld [vmem:[#allocation5 + $0x2b8] sm:$0xff]
    %v134 = vld [vmem:[#allocation5 + $0x2d0] sm:$0xff]
    %v135 = vld [vmem:[#allocation5 + $0x2e8] sm:$0xff]
    %v136 = vld [vmem:[#allocation5 + $0x300] sm:$0xff]
    %v137 = vld [vmem:[#allocation5 + $0x318] sm:$0xff]
    %v138 = vld [vmem:[#allocation5 + $0x330] sm:$0xff]
    %v139 = vld [vmem:[#allocation5 + $0x348] sm:$0xff]
    %v140 = vld [vmem:[#allocation5 + $0x360] sm:$0xff]
    %v141 = vld [vmem:[#allocation5 + $0x378] sm:$0xff]
    %v142 = vld [vmem:[#allocation5 + $0x390] sm:$0xff]
    %v143 = vld [vmem:[#allocation5 + $0x3a8] sm:$0xff]
    %v144 = vld [vmem:[#allocation5 + $0x3c0] sm:$0xff]
    %v145 = vld [vmem:[#allocation5 + $0x3d8] sm:$0xff]
    %v146 = vld [vmem:[#allocation5 + $0x3f0] sm:$0xff]
    %v147 = vld [vmem:[#allocation5 + $0x408] sm:$0xff]
    %v148 = vld [vmem:[#allocation5 + $0x420] sm:$0xff]
    %v149 = vld [vmem:[#allocation5 + $0x438] sm:$0xff]
    %v150 = vld [vmem:[#allocation5 + $0x450] sm:$0xff]
    %v151 = vld [vmem:[#allocation5 + $0x468] sm:$0xff]
    %v152 = vld [vmem:[#allocation5 + $0x480] sm:$0xff]
    %v153 = vld [vmem:[#allocation5 + $0x498] sm:$0xff]
    %v154 = vld [vmem:[#allocation5 + $0x4b0] sm:$0xff]
    %v155 = vld [vmem:[#allocation5 + $0x4c8] sm:$0xff]
    %v156 = vld [vmem:[#allocation5 + $0x4e0] sm:$0xff]
    %v157 = vld [vmem:[#allocation5 + $0x4f8] sm:$0xff]
    %v158 = vld [vmem:[#allocation5 + $0x510] sm:$0xff]
    %v159 = vld [vmem:[#allocation5 + $0x528] sm:$0xff]
    %v160 = vld [vmem:[#allocation5 + $0x540] sm:$0xff]
    %v161 = vld [vmem:[#allocation5 + $0x558] sm:$0xff]
    %v162 = vld [vmem:[#allocation5 + $0x570] sm:$0xff]
    %v163 = vld [vmem:[#allocation5 + $0x588] sm:$0xff]
    %v164 = vld [vmem:[#allocation5 + $0x5a0] sm:$0xff]
    %v165 = vld [vmem:[#allocation5 + $0x5b8] sm:$0xff]
    %v166 = vld [vmem:[#allocation5 + $0x5d0] sm:$0xff]
    %v167 = vld [vmem:[#allocation5 + $0x5e8] sm:$0xff]
    %v168 = vmul.f32 %v40, %v104
    %v169 = vmul.f32 %v41, %v105
    %v170 = vmul.f32 %v42, %v106
    %v171 = vmul.f32 %v43, %v107
    %v172 = vmul.f32 %v44, %v108
    %v173 = vmul.f32 %v45, %v109
    %v174 = vmul.f32 %v46, %v110
    %v175 = vmul.f32 %v47, %v111
    %v176 = vmul.f32 %v48, %v112
    %v177 = vmul.f32 %v49, %v113
    %v178 = vmul.f32 %v50, %v114
    %v179 = vmul.f32 %v51, %v115
    %v180 = vmul.f32 %v52, %v116
    %v181 = vmul.f32 %v53, %v117
    %v182 = vmul.f32 %v54, %v118
    %v183 = vmul.f32 %v55, %v119
    %v184 = vmul.f32 %v56, %v120
    %v185 = vmul.f32 %v57, %v121
    %v186 = vmul.f32 %v58, %v122
    %v187 = vmul.f32 %v59, %v123
    %v188 = vmul.f32 %v60, %v124
    %v189 = vmul.f32 %v61, %v125
    %v190 = vmul.f32 %v62, %v126
    %v191 = vmul.f32 %v63, %v127
    %v192 = vmul.f32 %v64, %v128
    %v193 = vmul.f32 %v65, %v129
    %v194 = vmul.f32 %v66, %v130
    %v195 = vmul.f32 %v67, %v131
    %v196 = vmul.f32 %v68, %v132
    %v197 = vmul.f32 %v69, %v133
    %v198 = vmul.f32 %v70, %v134
    %v199 = vmul.f32 %v71, %v135
    %v200 = vmul.f32 %v72, %v136
    %v201 = vmul.f32 %v73, %v137
    %v202 = vmul.f32 %v74, %v138
    %v203 = vmul.f32 %v75, %v139
    %v204 = vmul.f32 %v76, %v140
    %v205 = vmul.f32 %v77, %v141
    %v206 = vmul.f32 %v78, %v142
    %v207 = vmul.f32 %v79, %v143
    %v208 = vmul.f32 %v80, %v144
    %v209 = vmul.f32 %v81, %v145
    %v210 = vmul.f32 %v82, %v146
    %v211 = vmul.f32 %v83, %v147
    %v212 = vmul.f32 %v84, %v148
    %v213 = vmul.f32 %v85, %v149
    %v214 = vmul.f32 %v86, %v150
    %v215 = vmul.f32 %v87, %v151
    %v216 = vmul.f32 %v88, %v152
    %v217 = vmul.f32 %v89, %v153
    %v218 = vmul.f32 %v90, %v154
    %v219 = vmul.f32 %v91, %v155
    %v220 = vmul.f32 %v92, %v156
    %v221 = vmul.f32 %v93, %v157
    %v222 = vmul.f32 %v94, %v158
    %v223 = vmul.f32 %v95, %v159
    %v224 = vmul.f32 %v96, %v160
    %v225 = vmul.f32 %v97, %v161
    %v226 = vmul.f32 %v98, %v162
    %v227 = vmul.f32 %v99, %v163
    %v228 = vmul.f32 %v100, %v164
    %v229 = vmul.f32 %v101, %v165
    %v230 = vmul.f32 %v102, %v166
    %v231 = vmul.f32 %v103, %v167
    %v232 = vld [vmem:[#allocation5 + $0x8] sm:$0xff]
    %v233 = vld [vmem:[#allocation5 + $0x20] sm:$0xff]
    %v234 = vld [vmem:[#allocation5 + $0x38] sm:$0xff]
    %v235 = vld [vmem:[#allocation5 + $0x50] sm:$0xff]
    %v236 = vld [vmem:[#allocation5 + $0x68] sm:$0xff]
    %v237 = vld [vmem:[#allocation5 + $0x80] sm:$0xff]
    %v238 = vld [vmem:[#allocation5 + $0x98] sm:$0xff]
    %v239 = vld [vmem:[#allocation5 + $0xb0] sm:$0xff]
    %v240 = vld [vmem:[#allocation5 + $0xc8] sm:$0xff]
    %v241 = vld [vmem:[#allocation5 + $0xe0] sm:$0xff]
    %v242 = vld [vmem:[#allocation5 + $0xf8] sm:$0xff]
    %v243 = vld [vmem:[#allocation5 + $0x110] sm:$0xff]
    %v244 = vld [vmem:[#allocation5 + $0x128] sm:$0xff]
    %v245 = vld [vmem:[#allocation5 + $0x140] sm:$0xff]
    %v246 = vld [vmem:[#allocation5 + $0x158] sm:$0xff]
    %v247 = vld [vmem:[#allocation5 + $0x170] sm:$0xff]
    %v248 = vld [vmem:[#allocation5 + $0x188] sm:$0xff]
    %v249 = vld [vmem:[#allocation5 + $0x1a0] sm:$0xff]
    %v250 = vld [vmem:[#allocation5 + $0x1b8] sm:$0xff]
    %v251 = vld [vmem:[#allocation5 + $0x1d0] sm:$0xff]
    %v252 = vld [vmem:[#allocation5 + $0x1e8] sm:$0xff]
    %v253 = vld [vmem:[#allocation5 + $0x200] sm:$0xff]
    %v254 = vld [vmem:[#allocation5 + $0x218] sm:$0xff]
    %v255 = vld [vmem:[#allocation5 + $0x230] sm:$0xff]
    %v256 = vld [vmem:[#allocation5 + $0x248] sm:$0xff]
    %v257 = vld [vmem:[#allocation5 + $0x260] sm:$0xff]
    %v258 = vld [vmem:[#allocation5 + $0x278] sm:$0xff]
    %v259 = vld [vmem:[#allocation5 + $0x290] sm:$0xff]
    %v260 = vld [vmem:[#allocation5 + $0x2a8] sm:$0xff]
    %v261 = vld [vmem:[#allocation5 + $0x2c0] sm:$0xff]
    %v262 = vld [vmem:[#allocation5 + $0x2d8] sm:$0xff]
    %v263 = vld [vmem:[#allocation5 + $0x2f0] sm:$0xff]
    %v264 = vld [vmem:[#allocation5 + $0x308] sm:$0xff]
    %v265 = vld [vmem:[#allocation5 + $0x320] sm:$0xff]
    %v266 = vld [vmem:[#allocation5 + $0x338] sm:$0xff]
    %v267 = vld [vmem:[#allocation5 + $0x350] sm:$0xff]
    %v268 = vld [vmem:[#allocation5 + $0x368] sm:$0xff]
    %v269 = vld [vmem:[#allocation5 + $0x380] sm:$0xff]
    %v270 = vld [vmem:[#allocation5 + $0x398] sm:$0xff]
    %v271 = vld [vmem:[#allocation5 + $0x3b0] sm:$0xff]
    %v272 = vld [vmem:[#allocation5 + $0x3c8] sm:$0xff]
    %v273 = vld [vmem:[#allocation5 + $0x3e0] sm:$0xff]
    %v274 = vld [vmem:[#allocation5 + $0x3f8] sm:$0xff]
    %v275 = vld [vmem:[#allocation5 + $0x410] sm:$0xff]
    %v276 = vld [vmem:[#allocation5 + $0x428] sm:$0xff]
    %v277 = vld [vmem:[#allocation5 + $0x440] sm:$0xff]
    %v278 = vld [vmem:[#allocation5 + $0x458] sm:$0xff]
    %v279 = vld [vmem:[#allocation5 + $0x470] sm:$0xff]
    %v280 = vld [vmem:[#allocation5 + $0x488] sm:$0xff]
    %v281 = vld [vmem:[#allocation5 + $0x4a0] sm:$0xff]
    %v282 = vld [vmem:[#allocation5 + $0x4b8] sm:$0xff]
    %v283 = vld [vmem:[#allocation5 + $0x4d0] sm:$0xff]
    %v284 = vld [vmem:[#allocation5 + $0x4e8] sm:$0xff]
    %v285 = vld [vmem:[#allocation5 + $0x500] sm:$0xff]
    %v286 = vld [vmem:[#allocation5 + $0x518] sm:$0xff]
    %v287 = vld [vmem:[#allocation5 + $0x530] sm:$0xff]
    %v288 = vld [vmem:[#allocation5 + $0x548] sm:$0xff]
    %v289 = vld [vmem:[#allocation5 + $0x560] sm:$0xff]
    %v290 = vld [vmem:[#allocation5 + $0x578] sm:$0xff]
    %v291 = vld [vmem:[#allocation5 + $0x590] sm:$0xff]
    %v292 = vld [vmem:[#allocation5 + $0x5a8] sm:$0xff]
    %v293 = vld [vmem:[#allocation5 + $0x5c0] sm:$0xff]
    %v294 = vld [vmem:[#allocation5 + $0x5d8] sm:$0xff]
    %v295 = vld [vmem:[#allocation5 + $0x5f0] sm:$0xff]
    %v296 = vmul.f32 %v40, %v232
    %v297 = vmul.f32 %v41, %v233
    %v298 = vmul.f32 %v42, %v234
    %v299 = vmul.f32 %v43, %v235
    %v300 = vmul.f32 %v44, %v236
    %v301 = vmul.f32 %v45, %v237
    %v302 = vmul.f32 %v46, %v238
    %v303 = vmul.f32 %v47, %v239
    %v304 = vmul.f32 %v48, %v240
    %v305 = vmul.f32 %v49, %v241
    %v306 = vmul.f32 %v50, %v242
    %v307 = vmul.f32 %v51, %v243
    %v308 = vmul.f32 %v52, %v244
    %v309 = vmul.f32 %v53, %v245
    %v310 = vmul.f32 %v54, %v246
    %v311 = vmul.f32 %v55, %v247
    %v312 = vmul.f32 %v56, %v248
    %v313 = vmul.f32 %v57, %v249
    %v314 = vmul.f32 %v58, %v250
    %v315 = vmul.f32 %v59, %v251
    %v316 = vmul.f32 %v60, %v252
    %v317 = vmul.f32 %v61, %v253
    %v318 = vmul.f32 %v62, %v254
    %v319 = vmul.f32 %v63, %v255
    %v320 = vmul.f32 %v64, %v256
    %v321 = vmul.f32 %v65, %v257
    %v322 = vmul.f32 %v66, %v258
    %v323 = vmul.f32 %v67, %v259
    %v324 = vmul.f32 %v68, %v260
    %v325 = vmul.f32 %v69, %v261
    %v326 = vmul.f32 %v70, %v262
    %v327 = vmul.f32 %v71, %v263
    %v328 = vmul.f32 %v72, %v264
    %v329 = vmul.f32 %v73, %v265
    %v330 = vmul.f32 %v74, %v266
    %v331 = vmul.f32 %v75, %v267
    %v332 = vmul.f32 %v76, %v268
    %v333 = vmul.f32 %v77, %v269
    %v334 = vmul.f32 %v78, %v270
    %v335 = vmul.f32 %v79, %v271
    %v336 = vmul.f32 %v80, %v272
    %v337 = vmul.f32 %v81, %v273
    %v338 = vmul.f32 %v82, %v274
    %v339 = vmul.f32 %v83, %v275
    %v340 = vmul.f32 %v84, %v276
    %v341 = vmul.f32 %v85, %v277
    %v342 = vmul.f32 %v86, %v278
    %v343 = vmul.f32 %v87, %v279
    %v344 = vmul.f32 %v88, %v280
    %v345 = vmul.f32 %v89, %v281
    %v346 = vmul.f32 %v90, %v282
    %v347 = vmul.f32 %v91, %v283
    %v348 = vmul.f32 %v92, %v284
    %v349 = vmul.f32 %v93, %v285
    %v350 = vmul.f32 %v94, %v286
    %v351 = vmul.f32 %v95, %v287
    %v352 = vmul.f32 %v96, %v288
    %v353 = vmul.f32 %v97, %v289
    %v354 = vmul.f32 %v98, %v290
    %v355 = vmul.f32 %v99, %v291
    %v356 = vmul.f32 %v100, %v292
    %v357 = vmul.f32 %v101, %v293
    %v358 = vmul.f32 %v102, %v294
    %v359 = vmul.f32 %v103, %v295
    %v360 = vmul.f32 %v296, 0.3
    %v361 = vmul.f32 %v297, 0.3
    %v362 = vmul.f32 %v298, 0.3
    %v363 = vmul.f32 %v299, 0.3
    %v364 = vmul.f32 %v300, 0.3
    %v365 = vmul.f32 %v301, 0.3
    %v366 = vmul.f32 %v302, 0.3
    %v367 = vmul.f32 %v303, 0.3
    %v368 = vmul.f32 %v304, 0.3
    %v369 = vmul.f32 %v305, 0.3
    %v370 = vmul.f32 %v306, 0.3
    %v371 = vmul.f32 %v307, 0.3
    %v372 = vmul.f32 %v308, 0.3
    %v373 = vmul.f32 %v309, 0.3
    %v374 = vmul.f32 %v310, 0.3
    %v375 = vmul.f32 %v311, 0.3
    %v376 = vmul.f32 %v312, 0.3
    %v377 = vmul.f32 %v313, 0.3
    %v378 = vmul.f32 %v314, 0.3
    %v379 = vmul.f32 %v315, 0.3
    %v380 = vmul.f32 %v316, 0.3
    %v381 = vmul.f32 %v317, 0.3
    %v382 = vmul.f32 %v318, 0.3
    %v383 = vmul.f32 %v319, 0.3
    %v384 = vmul.f32 %v320, 0.3
    %v385 = vmul.f32 %v321, 0.3
    %v386 = vmul.f32 %v322, 0.3
    %v387 = vmul.f32 %v323, 0.3
    %v388 = vmul.f32 %v324, 0.3
    %v389 = vmul.f32 %v325, 0.3
    %v390 = vmul.f32 %v326, 0.3
    %v391 = vmul.f32 %v327, 0.3
    %v392 = vmul.f32 %v328, 0.3
    %v393 = vmul.f32 %v329, 0.3
    %v394 = vmul.f32 %v330, 0.3
    %v395 = vmul.f32 %v331, 0.3
    %v396 = vmul.f32 %v332, 0.3
    %v397 = vmul.f32 %v333, 0.3
    %v398 = vmul.f32 %v334, 0.3
    %v399 = vmul.f32 %v335, 0.3
    %v400 = vmul.f32 %v336, 0.3
    %v401 = vmul.f32 %v337, 0.3
    %v402 = vmul.f32 %v338, 0.3
    %v403 = vmul.f32 %v339, 0.3
    %v404 = vmul.f32 %v340, 0.3
    %v405 = vmul.f32 %v341, 0.3
    %v406 = vmul.f32 %v342, 0.3
    %v407 = vmul.f32 %v343, 0.3
    %v408 = vmul.f32 %v344, 0.3
    %v409 = vmul.f32 %v345, 0.3
    %v410 = vmul.f32 %v346, 0.3
    %v411 = vmul.f32 %v347, 0.3
    %v412 = vmul.f32 %v348, 0.3
    %v413 = vmul.f32 %v349, 0.3
    %v414 = vmul.f32 %v350, 0.3
    %v415 = vmul.f32 %v351, 0.3
    %v416 = vmul.f32 %v352, 0.3
    %v417 = vmul.f32 %v353, 0.3
    %v418 = vmul.f32 %v354, 0.3
    %v419 = vmul.f32 %v355, 0.3
    %v420 = vmul.f32 %v356, 0.3
    %v421 = vmul.f32 %v357, 0.3
    %v422 = vmul.f32 %v358, 0.3
    %v423 = vmul.f32 %v359, 0.3
    %v424 = vadd.f32 %v168, %v360
    %v425 = vadd.f32 %v169, %v361
    %v426 = vadd.f32 %v170, %v362
    %v427 = vadd.f32 %v171, %v363
    %v428 = vadd.f32 %v172, %v364
    %v429 = vadd.f32 %v173, %v365
    %v430 = vadd.f32 %v174, %v366
    %v431 = vadd.f32 %v175, %v367
    %v432 = vadd.f32 %v176, %v368
    %v433 = vadd.f32 %v177, %v369
    %v434 = vadd.f32 %v178, %v370
    %v435 = vadd.f32 %v179, %v371
    %v436 = vadd.f32 %v180, %v372
    %v437 = vadd.f32 %v181, %v373
    %v438 = vadd.f32 %v182, %v374
    %v439 = vadd.f32 %v183, %v375
    %v440 = vadd.f32 %v184, %v376
    %v441 = vadd.f32 %v185, %v377
    %v442 = vadd.f32 %v186, %v378
    %v443 = vadd.f32 %v187, %v379
    %v444 = vadd.f32 %v188, %v380
    %v445 = vadd.f32 %v189, %v381
    %v446 = vadd.f32 %v190, %v382
    %v447 = vadd.f32 %v191, %v383
    %v448 = vadd.f32 %v192, %v384
    %v449 = vadd.f32 %v193, %v385
    %v450 = vadd.f32 %v194, %v386
    %v451 = vadd.f32 %v195, %v387
    %v452 = vadd.f32 %v196, %v388
    %v453 = vadd.f32 %v197, %v389
    %v454 = vadd.f32 %v198, %v390
    %v455 = vadd.f32 %v199, %v391
    %v456 = vadd.f32 %v200, %v392
    %v457 = vadd.f32 %v201, %v393
    %v458 = vadd.f32 %v202, %v394
    %v459 = vadd.f32 %v203, %v395
    %v460 = vadd.f32 %v204, %v396
    %v461 = vadd.f32 %v205, %v397
    %v462 = vadd.f32 %v206, %v398
    %v463 = vadd.f32 %v207, %v399
    %v464 = vadd.f32 %v208, %v400
    %v465 = vadd.f32 %v209, %v401
    %v466 = vadd.f32 %v210, %v402
    %v467 = vadd.f32 %v211, %v403
    %v468 = vadd.f32 %v212, %v404
    %v469 = vadd.f32 %v213, %v405
    %v470 = vadd.f32 %v214, %v406
    %v471 = vadd.f32 %v215, %v407
    %v472 = vadd.f32 %v216, %v408
    %v473 = vadd.f32 %v217, %v409
    %v474 = vadd.f32 %v218, %v410
    %v475 = vadd.f32 %v219, %v411
    %v476 = vadd.f32 %v220, %v412
    %v477 = vadd.f32 %v221, %v413
    %v478 = vadd.f32 %v222, %v414
    %v479 = vadd.f32 %v223, %v415
    %v480 = vadd.f32 %v224, %v416
    %v481 = vadd.f32 %v225, %v417
    %v482 = vadd.f32 %v226, %v418
    %v483 = vadd.f32 %v227, %v419
    %v484 = vadd.f32 %v228, %v420
    %v485 = vadd.f32 %v229, %v421
    %v486 = vadd.f32 %v230, %v422
    %v487 = vadd.f32 %v231, %v423
    %488 = vst [vmem:[#allocation7] sm:$0xff] %v424
    %489 = vst [vmem:[#allocation7 + $0x20] sm:$0xff] %v425
    %490 = vst [vmem:[#allocation7 + $0x40] sm:$0xff] %v426
    %491 = vst [vmem:[#allocation7 + $0x60] sm:$0xff] %v427
    %492 = vst [vmem:[#allocation7 + $0x80] sm:$0xff] %v428
    %493 = vst [vmem:[#allocation7 + $0xa0] sm:$0xff] %v429
    %494 = vst [vmem:[#allocation7 + $0xc0] sm:$0xff] %v430
    %495 = vst [vmem:[#allocation7 + $0xe0] sm:$0xff] %v431
    %496 = vst [vmem:[#allocation7 + $0x100] sm:$0xff] %v432
    %497 = vst [vmem:[#allocation7 + $0x120] sm:$0xff] %v433
    %498 = vst [vmem:[#allocation7 + $0x140] sm:$0xff] %v434
    %499 = vst [vmem:[#allocation7 + $0x160] sm:$0xff] %v435
    %500 = vst [vmem:[#allocation7 + $0x180] sm:$0xff] %v436
    %501 = vst [vmem:[#allocation7 + $0x1a0] sm:$0xff] %v437
    %502 = vst [vmem:[#allocation7 + $0x1c0] sm:$0xff] %v438
    %503 = vst [vmem:[#allocation7 + $0x1e0] sm:$0xff] %v439
    %504 = vst [vmem:[#allocation7 + $0x200] sm:$0xff] %v440
    %505 = vst [vmem:[#allocation7 + $0x220] sm:$0xff] %v441
    %506 = vst [vmem:[#allocation7 + $0x240] sm:$0xff] %v442
    %507 = vst [vmem:[#allocation7 + $0x260] sm:$0xff] %v443
    %508 = vst [vmem:[#allocation7 + $0x280] sm:$0xff] %v444
    %509 = vst [vmem:[#allocation7 + $0x2a0] sm:$0xff] %v445
    %510 = vst [vmem:[#allocation7 + $0x2c0] sm:$0xff] %v446
    %511 = vst [vmem:[#allocation7 + $0x2e0] sm:$0xff] %v447
    %512 = vst [vmem:[#allocation7 + $0x300] sm:$0xff] %v448
    %513 = vst [vmem:[#allocation7 + $0x320] sm:$0xff] %v449
    %514 = vst [vmem:[#allocation7 + $0x340] sm:$0xff] %v450
    %515 = vst [vmem:[#allocation7 + $0x360] sm:$0xff] %v451
    %516 = vst [vmem:[#allocation7 + $0x380] sm:$0xff] %v452
    %517 = vst [vmem:[#allocation7 + $0x3a0] sm:$0xff] %v453
    %518 = vst [vmem:[#allocation7 + $0x3c0] sm:$0xff] %v454
    %519 = vst [vmem:[#allocation7 + $0x3e0] sm:$0xff] %v455
    %520 = vst [vmem:[#allocation7 + $0x400] sm:$0xff] %v456
    %521 = vst [vmem:[#allocation7 + $0x420] sm:$0xff] %v457
    %522 = vst [vmem:[#allocation7 + $0x440] sm:$0xff] %v458
    %523 = vst [vmem:[#allocation7 + $0x460] sm:$0xff] %v459
    %524 = vst [vmem:[#allocation7 + $0x480] sm:$0xff] %v460
    %525 = vst [vmem:[#allocation7 + $0x4a0] sm:$0xff] %v461
    %526 = vst [vmem:[#allocation7 + $0x4c0] sm:$0xff] %v462
    %527 = vst [vmem:[#allocation7 + $0x4e0] sm:$0xff] %v463
    %528 = vst [vmem:[#allocation7 + $0x500] sm:$0xff] %v464
    %529 = vst [vmem:[#allocation7 + $0x520] sm:$0xff] %v465
    %530 = vst [vmem:[#allocation7 + $0x540] sm:$0xff] %v466
    %531 = vst [vmem:[#allocation7 + $0x560] sm:$0xff] %v467
    %532 = vst [vmem:[#allocation7 + $0x580] sm:$0xff] %v468
    %533 = vst [vmem:[#allocation7 + $0x5a0] sm:$0xff] %v469
    %534 = vst [vmem:[#allocation7 + $0x5c0] sm:$0xff] %v470
    %535 = vst [vmem:[#allocation7 + $0x5e0] sm:$0xff] %v471
    %536 = vst [vmem:[#allocation7 + $0x600] sm:$0xff] %v472
    %537 = vst [vmem:[#allocation7 + $0x620] sm:$0xff] %v473
    %538 = vst [vmem:[#allocation7 + $0x640] sm:$0xff] %v474
    %539 = vst [vmem:[#allocation7 + $0x660] sm:$0xff] %v475
    %540 = vst [vmem:[#allocation7 + $0x680] sm:$0xff] %v476
    %541 = vst [vmem:[#allocation7 + $0x6a0] sm:$0xff] %v477
    %542 = vst [vmem:[#allocation7 + $0x6c0] sm:$0xff] %v478
    %543 = vst [vmem:[#allocation7 + $0x6e0] sm:$0xff] %v479
    %544 = vst [vmem:[#allocation7 + $0x700] sm:$0xff] %v480
    %545 = vst [vmem:[#allocation7 + $0x720] sm:$0xff] %v481
    %546 = vst [vmem:[#allocation7 + $0x740] sm:$0xff] %v482
    %547 = vst [vmem:[#allocation7 + $0x760] sm:$0xff] %v483
    %548 = vst [vmem:[#allocation7 + $0x780] sm:$0xff] %v484
    %549 = vst [vmem:[#allocation7 + $0x7a0] sm:$0xff] %v485
    %550 = vst [vmem:[#allocation7 + $0x7c0] sm:$0xff] %v486
    %551 = vst [vmem:[#allocation7 + $0x7e0] sm:$0xff] %v487
    %v552 = vld [vmem:[#allocation2 + $0x8] sm:$0xff]
    %v553 = vld [vmem:[#allocation2 + $0x18] sm:$0xff]
    %v554 = vld [vmem:[#allocation2 + $0x28] sm:$0xff]
    %v555 = vld [vmem:[#allocation2 + $0x38] sm:$0xff]
    %v556 = vld [vmem:[#allocation2 + $0x48] sm:$0xff]
    %v557 = vld [vmem:[#allocation2 + $0x58] sm:$0xff]
    %v558 = vld [vmem:[#allocation2 + $0x68] sm:$0xff]
    %v559 = vld [vmem:[#allocation2 + $0x78] sm:$0xff]
    %v560 = vld [vmem:[#allocation2 + $0x88] sm:$0xff]
    %v561 = vld [vmem:[#allocation2 + $0x98] sm:$0xff]
    %v562 = vld [vmem:[#allocation2 + $0xa8] sm:$0xff]
    %v563 = vld [vmem:[#allocation2 + $0xb8] sm:$0xff]
    %v564 = vld [vmem:[#allocation2 + $0xc8] sm:$0xff]
    %v565 = vld [vmem:[#allocation2 + $0xd8] sm:$0xff]
    %v566 = vld [vmem:[#allocation2 + $0xe8] sm:$0xff]
    %v567 = vld [vmem:[#allocation2 + $0xf8] sm:$0xff]
    %v568 = vld [vmem:[#allocation2 + $0x108] sm:$0xff]
    %v569 = vld [vmem:[#allocation2 + $0x118] sm:$0xff]
    %v570 = vld [vmem:[#allocation2 + $0x128] sm:$0xff]
    %v571 = vld [vmem:[#allocation2 + $0x138] sm:$0xff]
    %v572 = vld [vmem:[#allocation2 + $0x148] sm:$0xff]
    %v573 = vld [vmem:[#allocation2 + $0x158] sm:$0xff]
    %v574 = vld [vmem:[#allocation2 + $0x168] sm:$0xff]
    %v575 = vld [vmem:[#allocation2 + $0x178] sm:$0xff]
    %v576 = vld [vmem:[#allocation2 + $0x188] sm:$0xff]
    %v577 = vld [vmem:[#allocation2 + $0x198] sm:$0xff]
    %v578 = vld [vmem:[#allocation2 + $0x1a8] sm:$0xff]
    %v579 = vld [vmem:[#allocation2 + $0x1b8] sm:$0xff]
    %v580 = vld [vmem:[#allocation2 + $0x1c8] sm:$0xff]
    %v581 = vld [vmem:[#allocation2 + $0x1d8] sm:$0xff]
    %v582 = vld [vmem:[#allocation2 + $0x1e8] sm:$0xff]
    %v583 = vld [vmem:[#allocation2 + $0x1f8] sm:$0xff]
    %v584 = vld [vmem:[#allocation2 + $0x208] sm:$0xff]
    %v585 = vld [vmem:[#allocation2 + $0x218] sm:$0xff]
    %v586 = vld [vmem:[#allocation2 + $0x228] sm:$0xff]
    %v587 = vld [vmem:[#allocation2 + $0x238] sm:$0xff]
    %v588 = vld [vmem:[#allocation2 + $0x248] sm:$0xff]
    %v589 = vld [vmem:[#allocation2 + $0x258] sm:$0xff]
    %v590 = vld [vmem:[#allocation2 + $0x268] sm:$0xff]
    %v591 = vld [vmem:[#allocation2 + $0x278] sm:$0xff]
    %v592 = vld [vmem:[#allocation2 + $0x288] sm:$0xff]
    %v593 = vld [vmem:[#allocation2 + $0x298] sm:$0xff]
    %v594 = vld [vmem:[#allocation2 + $0x2a8] sm:$0xff]
    %v595 = vld [vmem:[#allocation2 + $0x2b8] sm:$0xff]
    %v596 = vld [vmem:[#allocation2 + $0x2c8] sm:$0xff]
    %v597 = vld [vmem:[#allocation2 + $0x2d8] sm:$0xff]
    %v598 = vld [vmem:[#allocation2 + $0x2e8] sm:$0xff]
    %v599 = vld [vmem:[#allocation2 + $0x2f8] sm:$0xff]
    %v600 = vld [vmem:[#allocation2 + $0x308] sm:$0xff]
    %v601 = vld [vmem:[#allocation2 + $0x318] sm:$0xff]
    %v602 = vld [vmem:[#allocation2 + $0x328] sm:$0xff]
    %v603 = vld [vmem:[#allocation2 + $0x338] sm:$0xff]
    %v604 = vld [vmem:[#allocation2 + $0x348] sm:$0xff]
    %v605 = vld [vmem:[#allocation2 + $0x358] sm:$0xff]
    %v606 = vld [vmem:[#allocation2 + $0x368] sm:$0xff]
    %v607 = vld [vmem:[#allocation2 + $0x378] sm:$0xff]
    %v608 = vld [vmem:[#allocation2 + $0x388] sm:$0xff]
    %v609 = vld [vmem:[#allocation2 + $0x398] sm:$0xff]
    %v610 = vld [vmem:[#allocation2 + $0x3a8] sm:$0xff]
    %v611 = vld [vmem:[#allocation2 + $0x3b8] sm:$0xff]
    %v612 = vld [vmem:[#allocation2 + $0x3c8] sm:$0xff]
    %v613 = vld [vmem:[#allocation2 + $0x3d8] sm:$0xff]
    %v614 = vld [vmem:[#allocation2 + $0x3e8] sm:$0xff]
    %v615 = vld [vmem:[#allocation2 + $0x3f8] sm:$0xff]
    %v616 = vld [vmem:[#allocation5 + $0x8] sm:$0xff]
    %v617 = vld [vmem:[#allocation5 + $0x20] sm:$0xff]
    %v618 = vld [vmem:[#allocation5 + $0x38] sm:$0xff]
    %v619 = vld [vmem:[#allocation5 + $0x50] sm:$0xff]
    %v620 = vld [vmem:[#allocation5 + $0x68] sm:$0xff]
    %v621 = vld [vmem:[#allocation5 + $0x80] sm:$0xff]
    %v622 = vld [vmem:[#allocation5 + $0x98] sm:$0xff]
    %v623 = vld [vmem:[#allocation5 + $0xb0] sm:$0xff]
    %v624 = vld [vmem:[#allocation5 + $0xc8] sm:$0xff]
    %v625 = vld [vmem:[#allocation5 + $0xe0] sm:$0xff]
    %v626 = vld [vmem:[#allocation5 + $0xf8] sm:$0xff]
    %v627 = vld [vmem:[#allocation5 + $0x110] sm:$0xff]
    %v628 = vld [vmem:[#allocation5 + $0x128] sm:$0xff]
    %v629 = vld [vmem:[#allocation5 + $0x140] sm:$0xff]
    %v630 = vld [vmem:[#allocation5 + $0x158] sm:$0xff]
    %v631 = vld [vmem:[#allocation5 + $0x170] sm:$0xff]
    %v632 = vld [vmem:[#allocation5 + $0x188] sm:$0xff]
    %v633 = vld [vmem:[#allocation5 + $0x1a0] sm:$0xff]
    %v634 = vld [vmem:[#allocation5 + $0x1b8] sm:$0xff]
    %v635 = vld [vmem:[#allocation5 + $0x1d0] sm:$0xff]
    %v636 = vld [vmem:[#allocation5 + $0x1e8] sm:$0xff]
    %v637 = vld [vmem:[#allocation5 + $0x200] sm:$0xff]
    %v638 = vld [vmem:[#allocation5 + $0x218] sm:$0xff]
    %v639 = vld [vmem:[#allocation5 + $0x230] sm:$0xff]
    %v640 = vld [vmem:[#allocation5 + $0x248] sm:$0xff]
    %v641 = vld [vmem:[#allocation5 + $0x260] sm:$0xff]
    %v642 = vld [vmem:[#allocation5 + $0x278] sm:$0xff]
    %v643 = vld [vmem:[#allocation5 + $0x290] sm:$0xff]
    %v644 = vld [vmem:[#allocation5 + $0x2a8] sm:$0xff]
    %v645 = vld [vmem:[#allocation5 + $0x2c0] sm:$0xff]
    %v646 = vld [vmem:[#allocation5 + $0x2d8] sm:$0xff]
    %v647 = vld [vmem:[#allocation5 + $0x2f0] sm:$0xff]
    %v648 = vld [vmem:[#allocation5 + $0x308] sm:$0xff]
    %v649 = vld [vmem:[#allocation5 + $0x320] sm:$0xff]
    %v650 = vld [vmem:[#allocation5 + $0x338] sm:$0xff]
    %v651 = vld [vmem:[#allocation5 + $0x350] sm:$0xff]
    %v652 = vld [vmem:[#allocation5 + $0x368] sm:$0xff]
    %v653 = vld [vmem:[#allocation5 + $0x380] sm:$0xff]
    %v654 = vld [vmem:[#allocation5 + $0x398] sm:$0xff]
    %v655 = vld [vmem:[#allocation5 + $0x3b0] sm:$0xff]
    %v656 = vld [vmem:[#allocation5 + $0x3c8] sm:$0xff]
    %v657 = vld [vmem:[#allocation5 + $0x3e0] sm:$0xff]
    %v658 = vld [vmem:[#allocation5 + $0x3f8] sm:$0xff]
    %v659 = vld [vmem:[#allocation5 + $0x410] sm:$0xff]
    %v660 = vld [vmem:[#allocation5 + $0x428] sm:$0xff]
    %v661 = vld [vmem:[#allocation5 + $0x440] sm:$0xff]
    %v662 = vld [vmem:[#allocation5 + $0x458] sm:$0xff]
    %v663 = vld [vmem:[#allocation5 + $0x470] sm:$0xff]
    %v664 = vld [vmem:[#allocation5 + $0x488] sm:$0xff]
    %v665 = vld [vmem:[#allocation5 + $0x4a0] sm:$0xff]
    %v666 = vld [vmem:[#allocation5 + $0x4b8] sm:$0xff]
    %v667 = vld [vmem:[#allocation5 + $0x4d0] sm:$0xff]
    %v668 = vld [vmem:[#allocation5 + $0x4e8] sm:$0xff]
    %v669 = vld [vmem:[#allocation5 + $0x500] sm:$0xff]
    %v670 = vld [vmem:[#allocation5 + $0x518] sm:$0xff]
    %v671 = vld [vmem:[#allocation5 + $0x530] sm:$0xff]
    %v672 = vld [vmem:[#allocation5 + $0x548] sm:$0xff]
    %v673 = vld [vmem:[#allocation5 + $0x560] sm:$0xff]
    %v674 = vld [vmem:[#allocation5 + $0x578] sm:$0xff]
    %v675 = vld [vmem:[#allocation5 + $0x590] sm:$0xff]
    %v676 = vld [vmem:[#allocation5 + $0x5a8] sm:$0xff]
    %v677 = vld [vmem:[#allocation5 + $0x5c0] sm:$0xff]
    %v678 = vld [vmem:[#allocation5 + $0x5d8] sm:$0xff]
    %v679 = vld [vmem:[#allocation5 + $0x5f0] sm:$0xff]
    %v680 = vmul.f32 %v552, %v616
    %v681 = vmul.f32 %v553, %v617
    %v682 = vmul.f32 %v554, %v618
    %v683 = vmul.f32 %v555, %v619
    %v684 = vmul.f32 %v556, %v620
    %v685 = vmul.f32 %v557, %v621
    %v686 = vmul.f32 %v558, %v622
    %v687 = vmul.f32 %v559, %v623
    %v688 = vmul.f32 %v560, %v624
    %v689 = vmul.f32 %v561, %v625
    %v690 = vmul.f32 %v562, %v626
    %v691 = vmul.f32 %v563, %v627
    %v692 = vmul.f32 %v564, %v628
    %v693 = vmul.f32 %v565, %v629
    %v694 = vmul.f32 %v566, %v630
    %v695 = vmul.f32 %v567, %v631
    %v696 = vmul.f32 %v568, %v632
    %v697 = vmul.f32 %v569, %v633
    %v698 = vmul.f32 %v570, %v634
    %v699 = vmul.f32 %v571, %v635
    %v700 = vmul.f32 %v572, %v636
    %v701 = vmul.f32 %v573, %v637
    %v702 = vmul.f32 %v574, %v638
    %v703 = vmul.f32 %v575, %v639
    %v704 = vmul.f32 %v576, %v640
    %v705 = vmul.f32 %v577, %v641
    %v706 = vmul.f32 %v578, %v642
    %v707 = vmul.f32 %v579, %v643
    %v708 = vmul.f32 %v580, %v644
    %v709 = vmul.f32 %v581, %v645
    %v710 = vmul.f32 %v582, %v646
    %v711 = vmul.f32 %v583, %v647
    %v712 = vmul.f32 %v584, %v648
    %v713 = vmul.f32 %v585, %v649
    %v714 = vmul.f32 %v586, %v650
    %v715 = vmul.f32 %v587, %v651
    %v716 = vmul.f32 %v588, %v652
    %v717 = vmul.f32 %v589, %v653
    %v718 = vmul.f32 %v590, %v654
    %v719 = vmul.f32 %v591, %v655
    %v720 = vmul.f32 %v592, %v656
    %v721 = vmul.f32 %v593, %v657
    %v722 = vmul.f32 %v594, %v658
    %v723 = vmul.f32 %v595, %v659
    %v724 = vmul.f32 %v596, %v660
    %v725 = vmul.f32 %v597, %v661
    %v726 = vmul.f32 %v598, %v662
    %v727 = vmul.f32 %v599, %v663
    %v728 = vmul.f32 %v600, %v664
    %v729 = vmul.f32 %v601, %v665
    %v730 = vmul.f32 %v602, %v666
    %v731 = vmul.f32 %v603, %v667
    %v732 = vmul.f32 %v604, %v668
    %v733 = vmul.f32 %v605, %v669
    %v734 = vmul.f32 %v606, %v670
    %v735 = vmul.f32 %v607, %v671
    %v736 = vmul.f32 %v608, %v672
    %v737 = vmul.f32 %v609, %v673
    %v738 = vmul.f32 %v610, %v674
    %v739 = vmul.f32 %v611, %v675
    %v740 = vmul.f32 %v612, %v676
    %v741 = vmul.f32 %v613, %v677
    %v742 = vmul.f32 %v614, %v678
    %v743 = vmul.f32 %v615, %v679
    %v744 = vmul.f32 %v680, 0.5
    %v745 = vmul.f32 %v681, 0.5
    %v746 = vmul.f32 %v682, 0.5
    %v747 = vmul.f32 %v683, 0.5
    %v748 = vmul.f32 %v684, 0.5
    %v749 = vmul.f32 %v685, 0.5
    %v750 = vmul.f32 %v686, 0.5
    %v751 = vmul.f32 %v687, 0.5
    %v752 = vmul.f32 %v688, 0.5
    %v753 = vmul.f32 %v689, 0.5
    %v754 = vmul.f32 %v690, 0.5
    %v755 = vmul.f32 %v691, 0.5
    %v756 = vmul.f32 %v692, 0.5
    %v757 = vmul.f32 %v693, 0.5
    %v758 = vmul.f32 %v694, 0.5
    %v759 = vmul.f32 %v695, 0.5
    %v760 = vmul.f32 %v696, 0.5
    %v761 = vmul.f32 %v697, 0.5
    %v762 = vmul.f32 %v698, 0.5
    %v763 = vmul.f32 %v699, 0.5
    %v764 = vmul.f32 %v700, 0.5
    %v765 = vmul.f32 %v701, 0.5
    %v766 = vmul.f32 %v702, 0.5
    %v767 = vmul.f32 %v703, 0.5
    %v768 = vmul.f32 %v704, 0.5
    %v769 = vmul.f32 %v705, 0.5
    %v770 = vmul.f32 %v706, 0.5
    %v771 = vmul.f32 %v707, 0.5
    %v772 = vmul.f32 %v708, 0.5
    %v773 = vmul.f32 %v709, 0.5
    %v774 = vmul.f32 %v710, 0.5
    %v775 = vmul.f32 %v711, 0.5
    %v776 = vmul.f32 %v712, 0.5
    %v777 = vmul.f32 %v713, 0.5
    %v778 = vmul.f32 %v714, 0.5
    %v779 = vmul.f32 %v715, 0.5
    %v780 = vmul.f32 %v716, 0.5
    %v781 = vmul.f32 %v717, 0.5
    %v782 = vmul.f32 %v718, 0.5
    %v783 = vmul.f32 %v719, 0.5
    %v784 = vmul.f32 %v720, 0.5
    %v785 = vmul.f32 %v721, 0.5
    %v786 = vmul.f32 %v722, 0.5
    %v787 = vmul.f32 %v723, 0.5
    %v788 = vmul.f32 %v724, 0.5
    %v789 = vmul.f32 %v725, 0.5
    %v790 = vmul.f32 %v726, 0.5
    %v791 = vmul.f32 %v727, 0.5
    %v792 = vmul.f32 %v728, 0.5
    %v793 = vmul.f32 %v729, 0.5
    %v794 = vmul.f32 %v730, 0.5
    %v795 = vmul.f32 %v731, 0.5
    %v796 = vmul.f32 %v732, 0.5
    %v797 = vmul.f32 %v733, 0.5
    %v798 = vmul.f32 %v734, 0.5
    %v799 = vmul.f32 %v735, 0.5
    %v800 = vmul.f32 %v736, 0.5
    %v801 = vmul.f32 %v737, 0.5
    %v802 = vmul.f32 %v738, 0.5
    %v803 = vmul.f32 %v739, 0.5
    %v804 = vmul.f32 %v740, 0.5
    %v805 = vmul.f32 %v741, 0.5
    %v806 = vmul.f32 %v742, 0.5
    %v807 = vmul.f32 %v743, 0.5
    %808 = vst [vmem:[#allocation7 + $0x8] sm:$0xff] %v744
    %809 = vst [vmem:[#allocation7 + $0x28] sm:$0xff] %v745
    %810 = vst [vmem:[#allocation7 + $0x48] sm:$0xff] %v746
    %811 = vst [vmem:[#allocation7 + $0x68] sm:$0xff] %v747
    %812 = vst [vmem:[#allocation7 + $0x88] sm:$0xff] %v748
    %813 = vst [vmem:[#allocation7 + $0xa8] sm:$0xff] %v749
    %814 = vst [vmem:[#allocation7 + $0xc8] sm:$0xff] %v750
    %815 = vst [vmem:[#allocation7 + $0xe8] sm:$0xff] %v751
    %816 = vst [vmem:[#allocation7 + $0x108] sm:$0xff] %v752
    %817 = vst [vmem:[#allocation7 + $0x128] sm:$0xff] %v753
    %818 = vst [vmem:[#allocation7 + $0x148] sm:$0xff] %v754
    %819 = vst [vmem:[#allocation7 + $0x168] sm:$0xff] %v755
    %820 = vst [vmem:[#allocation7 + $0x188] sm:$0xff] %v756
    %821 = vst [vmem:[#allocation7 + $0x1a8] sm:$0xff] %v757
    %822 = vst [vmem:[#allocation7 + $0x1c8] sm:$0xff] %v758
    %823 = vst [vmem:[#allocation7 + $0x1e8] sm:$0xff] %v759
    %824 = vst [vmem:[#allocation7 + $0x208] sm:$0xff] %v760
    %825 = vst [vmem:[#allocation7 + $0x228] sm:$0xff] %v761
    %826 = vst [vmem:[#allocation7 + $0x248] sm:$0xff] %v762
    %827 = vst [vmem:[#allocation7 + $0x268] sm:$0xff] %v763
    %828 = vst [vmem:[#allocation7 + $0x288] sm:$0xff] %v764
    %829 = vst [vmem:[#allocation7 + $0x2a8] sm:$0xff] %v765
    %830 = vst [vmem:[#allocation7 + $0x2c8] sm:$0xff] %v766
    %831 = vst [vmem:[#allocation7 + $0x2e8] sm:$0xff] %v767
    %832 = vst [vmem:[#allocation7 + $0x308] sm:$0xff] %v768
    %833 = vst [vmem:[#allocation7 + $0x328] sm:$0xff] %v769
    %834 = vst [vmem:[#allocation7 + $0x348] sm:$0xff] %v770
    %835 = vst [vmem:[#allocation7 + $0x368] sm:$0xff] %v771
    %836 = vst [vmem:[#allocation7 + $0x388] sm:$0xff] %v772
    %837 = vst [vmem:[#allocation7 + $0x3a8] sm:$0xff] %v773
    %838 = vst [vmem:[#allocation7 + $0x3c8] sm:$0xff] %v774
    %839 = vst [vmem:[#allocation7 + $0x3e8] sm:$0xff] %v775
    %840 = vst [vmem:[#allocation7 + $0x408] sm:$0xff] %v776
    %841 = vst [vmem:[#allocation7 + $0x428] sm:$0xff] %v777
    %842 = vst [vmem:[#allocation7 + $0x448] sm:$0xff] %v778
    %843 = vst [vmem:[#allocation7 + $0x468] sm:$0xff] %v779
    %844 = vst [vmem:[#allocation7 + $0x488] sm:$0xff] %v780
    %845 = vst [vmem:[#allocation7 + $0x4a8] sm:$0xff] %v781
    %846 = vst [vmem:[#allocation7 + $0x4c8] sm:$0xff] %v782
    %847 = vst [vmem:[#allocation7 + $0x4e8] sm:$0xff] %v783
    %848 = vst [vmem:[#allocation7 + $0x508] sm:$0xff] %v784
    %849 = vst [vmem:[#allocation7 + $0x528] sm:$0xff] %v785
    %850 = vst [vmem:[#allocation7 + $0x548] sm:$0xff] %v786
    %851 = vst [vmem:[#allocation7 + $0x568] sm:$0xff] %v787
    %852 = vst [vmem:[#allocation7 + $0x588] sm:$0xff] %v788
    %853 = vst [vmem:[#allocation7 + $0x5a8] sm:$0xff] %v789
    %854 = vst [vmem:[#allocation7 + $0x5c8] sm:$0xff] %v790
    %855 = vst [vmem:[#allocation7 + $0x5e8] sm:$0xff] %v791
    %856 = vst [vmem:[#allocation7 + $0x608] sm:$0xff] %v792
    %857 = vst [vmem:[#allocation7 + $0x628] sm:$0xff] %v793
    %858 = vst [vmem:[#allocation7 + $0x648] sm:$0xff] %v794
    %859 = vst [vmem:[#allocation7 + $0x668] sm:$0xff] %v795
    %860 = vst [vmem:[#allocation7 + $0x688] sm:$0xff] %v796
    %861 = vst [vmem:[#allocation7 + $0x6a8] sm:$0xff] %v797
    %862 = vst [vmem:[#allocation7 + $0x6c8] sm:$0xff] %v798
    %863 = vst [vmem:[#allocation7 + $0x6e8] sm:$0xff] %v799
    %864 = vst [vmem:[#allocation7 + $0x708] sm:$0xff] %v800
    %865 = vst [vmem:[#allocation7 + $0x728] sm:$0xff] %v801
    %866 = vst [vmem:[#allocation7 + $0x748] sm:$0xff] %v802
    %867 = vst [vmem:[#allocation7 + $0x768] sm:$0xff] %v803
    %868 = vst [vmem:[#allocation7 + $0x788] sm:$0xff] %v804
    %869 = vst [vmem:[#allocation7 + $0x7a8] sm:$0xff] %v805
    %870 = vst [vmem:[#allocation7 + $0x7c8] sm:$0xff] %v806
    %871 = vst [vmem:[#allocation7 + $0x7e8] sm:$0xff] %v807
    %v872 = vld [vmem:[#allocation2] sm:$0xff]
    %v873 = vld [vmem:[#allocation2 + $0x10] sm:$0xff]
    %v874 = vld [vmem:[#allocation2 + $0x20] sm:$0xff]
    %v875 = vld [vmem:[#allocation2 + $0x30] sm:$0xff]
    %v876 = vld [vmem:[#allocation2 + $0x40] sm:$0xff]
    %v877 = vld [vmem:[#allocation2 + $0x50] sm:$0xff]
    %v878 = vld [vmem:[#allocation2 + $0x60] sm:$0xff]
    %v879 = vld [vmem:[#allocation2 + $0x70] sm:$0xff]
    %v880 = vld [vmem:[#allocation2 + $0x80] sm:$0xff]
    %v881 = vld [vmem:[#allocation2 + $0x90] sm:$0xff]
    %v882 = vld [vmem:[#allocation2 + $0xa0] sm:$0xff]
    %v883 = vld [vmem:[#allocation2 + $0xb0] sm:$0xff]
    %v884 = vld [vmem:[#allocation2 + $0xc0] sm:$0xff]
    %v885 = vld [vmem:[#allocation2 + $0xd0] sm:$0xff]
    %v886 = vld [vmem:[#allocation2 + $0xe0] sm:$0xff]
    %v887 = vld [vmem:[#allocation2 + $0xf0] sm:$0xff]
    %v888 = vld [vmem:[#allocation2 + $0x100] sm:$0xff]
    %v889 = vld [vmem:[#allocation2 + $0x110] sm:$0xff]
    %v890 = vld [vmem:[#allocation2 + $0x120] sm:$0xff]
    %v891 = vld [vmem:[#allocation2 + $0x130] sm:$0xff]
    %v892 = vld [vmem:[#allocation2 + $0x140] sm:$0xff]
    %v893 = vld [vmem:[#allocation2 + $0x150] sm:$0xff]
    %v894 = vld [vmem:[#allocation2 + $0x160] sm:$0xff]
    %v895 = vld [vmem:[#allocation2 + $0x170] sm:$0xff]
    %v896 = vld [vmem:[#allocation2 + $0x180] sm:$0xff]
    %v897 = vld [vmem:[#allocation2 + $0x190] sm:$0xff]
    %v898 = vld [vmem:[#allocation2 + $0x1a0] sm:$0xff]
    %v899 = vld [vmem:[#allocation2 + $0x1b0] sm:$0xff]
    %v900 = vld [vmem:[#allocation2 + $0x1c0] sm:$0xff]
    %v901 = vld [vmem:[#allocation2 + $0x1d0] sm:$0xff]
    %v902 = vld [vmem:[#allocation2 + $0x1e0] sm:$0xff]
    %v903 = vld [vmem:[#allocation2 + $0x1f0] sm:$0xff]
    %v904 = vld [vmem:[#allocation2 + $0x200] sm:$0xff]
    %v905 = vld [vmem:[#allocation2 + $0x210] sm:$0xff]
    %v906 = vld [vmem:[#allocation2 + $0x220] sm:$0xff]
    %v907 = vld [vmem:[#allocation2 + $0x230] sm:$0xff]
    %v908 = vld [vmem:[#allocation2 + $0x240] sm:$0xff]
    %v909 = vld [vmem:[#allocation2 + $0x250] sm:$0xff]
    %v910 = vld [vmem:[#allocation2 + $0x260] sm:$0xff]
    %v911 = vld [vmem:[#allocation2 + $0x270] sm:$0xff]
    %v912 = vld [vmem:[#allocation2 + $0x280] sm:$0xff]
    %v913 = vld [vmem:[#allocation2 + $0x290] sm:$0xff]
    %v914 = vld [vmem:[#allocation2 + $0x2a0] sm:$0xff]
    %v915 = vld [vmem:[#allocation2 + $0x2b0] sm:$0xff]
    %v916 = vld [vmem:[#allocation2 + $0x2c0] sm:$0xff]
    %v917 = vld [vmem:[#allocation2 + $0x2d0] sm:$0xff]
    %v918 = vld [vmem:[#allocation2 + $0x2e0] sm:$0xff]
    %v919 = vld [vmem:[#allocation2 + $0x2f0] sm:$0xff]
    %v920 = vld [vmem:[#allocation2 + $0x300] sm:$0xff]
    %v921 = vld [vmem:[#allocation2 + $0x310] sm:$0xff]
    %v922 = vld [vmem:[#allocation2 + $0x320] sm:$0xff]
    %v923 = vld [vmem:[#allocation2 + $0x330] sm:$0xff]
    %v924 = vld [vmem:[#allocation2 + $0x340] sm:$0xff]
    %v925 = vld [vmem:[#allocation2 + $0x350] sm:$0xff]
    %v926 = vld [vmem:[#allocation2 + $0x360] sm:$0xff]
    %v927 = vld [vmem:[#allocation2 + $0x370] sm:$0xff]
    %v928 = vld [vmem:[#allocation2 + $0x380] sm:$0xff]
    %v929 = vld [vmem:[#allocation2 + $0x390] sm:$0xff]
    %v930 = vld [vmem:[#allocation2 + $0x3a0] sm:$0xff]
    %v931 = vld [vmem:[#allocation2 + $0x3b0] sm:$0xff]
    %v932 = vld [vmem:[#allocation2 + $0x3c0] sm:$0xff]
    %v933 = vld [vmem:[#allocation2 + $0x3d0] sm:$0xff]
    %v934 = vld [vmem:[#allocation2 + $0x3e0] sm:$0xff]
    %v935 = vld [vmem:[#allocation2 + $0x3f0] sm:$0xff]
    %v936 = vld [vmem:[#allocation5 + $0x10] sm:$0xff]
    %v937 = vld [vmem:[#allocation5 + $0x28] sm:$0xff]
    %v938 = vld [vmem:[#allocation5 + $0x40] sm:$0xff]
    %v939 = vld [vmem:[#allocation5 + $0x58] sm:$0xff]
    %v940 = vld [vmem:[#allocation5 + $0x70] sm:$0xff]
    %v941 = vld [vmem:[#allocation5 + $0x88] sm:$0xff]
    %v942 = vld [vmem:[#allocation5 + $0xa0] sm:$0xff]
    %v943 = vld [vmem:[#allocation5 + $0xb8] sm:$0xff]
    %v944 = vld [vmem:[#allocation5 + $0xd0] sm:$0xff]
    %v945 = vld [vmem:[#allocation5 + $0xe8] sm:$0xff]
    %v946 = vld [vmem:[#allocation5 + $0x100] sm:$0xff]
    %v947 = vld [vmem:[#allocation5 + $0x118] sm:$0xff]
    %v948 = vld [vmem:[#allocation5 + $0x130] sm:$0xff]
    %v949 = vld [vmem:[#allocation5 + $0x148] sm:$0xff]
    %v950 = vld [vmem:[#allocation5 + $0x160] sm:$0xff]
    %v951 = vld [vmem:[#allocation5 + $0x178] sm:$0xff]
    %v952 = vld [vmem:[#allocation5 + $0x190] sm:$0xff]
    %v953 = vld [vmem:[#allocation5 + $0x1a8] sm:$0xff]
    %v954 = vld [vmem:[#allocation5 + $0x1c0] sm:$0xff]
    %v955 = vld [vmem:[#allocation5 + $0x1d8] sm:$0xff]
    %v956 = vld [vmem:[#allocation5 + $0x1f0] sm:$0xff]
    %v957 = vld [vmem:[#allocation5 + $0x208] sm:$0xff]
    %v958 = vld [vmem:[#allocation5 + $0x220] sm:$0xff]
    %v959 = vld [vmem:[#allocation5 + $0x238] sm:$0xff]
    %v960 = vld [vmem:[#allocation5 + $0x250] sm:$0xff]
    %v961 = vld [vmem:[#allocation5 + $0x268] sm:$0xff]
    %v962 = vld [vmem:[#allocation5 + $0x280] sm:$0xff]
    %v963 = vld [vmem:[#allocation5 + $0x298] sm:$0xff]
    %v964 = vld [vmem:[#allocation5 + $0x2b0] sm:$0xff]
    %v965 = vld [vmem:[#allocation5 + $0x2c8] sm:$0xff]
    %v966 = vld [vmem:[#allocation5 + $0x2e0] sm:$0xff]
    %v967 = vld [vmem:[#allocation5 + $0x2f8] sm:$0xff]
    %v968 = vld [vmem:[#allocation5 + $0x310] sm:$0xff]
    %v969 = vld [vmem:[#allocation5 + $0x328] sm:$0xff]
    %v970 = vld [vmem:[#allocation5 + $0x340] sm:$0xff]
    %v971 = vld [vmem:[#allocation5 + $0x358] sm:$0xff]
    %v972 = vld [vmem:[#allocation5 + $0x370] sm:$0xff]
    %v973 = vld [vmem:[#allocation5 + $0x388] sm:$0xff]
    %v974 = vld [vmem:[#allocation5 + $0x3a0] sm:$0xff]
    %v975 = vld [vmem:[#allocation5 + $0x3b8] sm:$0xff]
    %v976 = vld [vmem:[#allocation5 + $0x3d0] sm:$0xff]
    %v977 = vld [vmem:[#allocation5 + $0x3e8] sm:$0xff]
    %v978 = vld [vmem:[#allocation5 + $0x400] sm:$0xff]
    %v979 = vld [vmem:[#allocation5 + $0x418] sm:$0xff]
    %v980 = vld [vmem:[#allocation5 + $0x430] sm:$0xff]
    %v981 = vld [vmem:[#allocation5 + $0x448] sm:$0xff]
    %v982 = vld [vmem:[#allocation5 + $0x460] sm:$0xff]
    %v983 = vld [vmem:[#allocation5 + $0x478] sm:$0xff]
    %v984 = vld [vmem:[#allocation5 + $0x490] sm:$0xff]
    %v985 = vld [vmem:[#allocation5 + $0x4a8] sm:$0xff]
    %v986 = vld [vmem:[#allocation5 + $0x4c0] sm:$0xff]
    %v987 = vld [vmem:[#allocation5 + $0x4d8] sm:$0xff]
    %v988 = vld [vmem:[#allocation5 + $0x4f0] sm:$0xff]
    %v989 = vld [vmem:[#allocation5 + $0x508] sm:$0xff]
    %v990 = vld [vmem:[#allocation5 + $0x520] sm:$0xff]
    %v991 = vld [vmem:[#allocation5 + $0x538] sm:$0xff]
    %v992 = vld [vmem:[#allocation5 + $0x550] sm:$0xff]
    %v993 = vld [vmem:[#allocation5 + $0x568] sm:$0xff]
    %v994 = vld [vmem:[#allocation5 + $0x580] sm:$0xff]
    %v995 = vld [vmem:[#allocation5 + $0x598] sm:$0xff]
    %v996 = vld [vmem:[#allocation5 + $0x5b0] sm:$0xff]
    %v997 = vld [vmem:[#allocation5 + $0x5c8] sm:$0xff]
    %v998 = vld [vmem:[#allocation5 + $0x5e0] sm:$0xff]
    %v999 = vld [vmem:[#allocation5 + $0x5f8] sm:$0xff]
    %v1000 = vmul.f32 %v872, %v936
    %v1001 = vmul.f32 %v873, %v937
    %v1002 = vmul.f32 %v874, %v938
    %v1003 = vmul.f32 %v875, %v939
    %v1004 = vmul.f32 %v876, %v940
    %v1005 = vmul.f32 %v877, %v941
    %v1006 = vmul.f32 %v878, %v942
    %v1007 = vmul.f32 %v879, %v943
    %v1008 = vmul.f32 %v880, %v944
    %v1009 = vmul.f32 %v881, %v945
    %v1010 = vmul.f32 %v882, %v946
    %v1011 = vmul.f32 %v883, %v947
    %v1012 = vmul.f32 %v884, %v948
    %v1013 = vmul.f32 %v885, %v949
    %v1014 = vmul.f32 %v886, %v950
    %v1015 = vmul.f32 %v887, %v951
    %v1016 = vmul.f32 %v888, %v952
    %v1017 = vmul.f32 %v889, %v953
    %v1018 = vmul.f32 %v890, %v954
    %v1019 = vmul.f32 %v891, %v955
    %v1020 = vmul.f32 %v892, %v956
    %v1021 = vmul.f32 %v893, %v957
    %v1022 = vmul.f32 %v894, %v958
    %v1023 = vmul.f32 %v895, %v959
    %v1024 = vmul.f32 %v896, %v960
    %v1025 = vmul.f32 %v897, %v961
    %v1026 = vmul.f32 %v898, %v962
    %v1027 = vmul.f32 %v899, %v963
    %v1028 = vmul.f32 %v900, %v964
    %v1029 = vmul.f32 %v901, %v965
    %v1030 = vmul.f32 %v902, %v966
    %v1031 = vmul.f32 %v903, %v967
    %v1032 = vmul.f32 %v904, %v968
    %v1033 = vmul.f32 %v905, %v969
    %v1034 = vmul.f32 %v906, %v970
    %v1035 = vmul.f32 %v907, %v971
    %v1036 = vmul.f32 %v908, %v972
    %v1037 = vmul.f32 %v909, %v973
    %v1038 = vmul.f32 %v910, %v974
    %v1039 = vmul.f32 %v911, %v975
    %v1040 = vmul.f32 %v912, %v976
    %v1041 = vmul.f32 %v913, %v977
    %v1042 = vmul.f32 %v914, %v978
    %v1043 = vmul.f32 %v915, %v979
    %v1044 = vmul.f32 %v916, %v980
    %v1045 = vmul.f32 %v917, %v981
    %v1046 = vmul.f32 %v918, %v982
    %v1047 = vmul.f32 %v919, %v983
    %v1048 = vmul.f32 %v920, %v984
    %v1049 = vmul.f32 %v921, %v985
    %v1050 = vmul.f32 %v922, %v986
    %v1051 = vmul.f32 %v923, %v987
    %v1052 = vmul.f32 %v924, %v988
    %v1053 = vmul.f32 %v925, %v989
    %v1054 = vmul.f32 %v926, %v990
    %v1055 = vmul.f32 %v927, %v991
    %v1056 = vmul.f32 %v928, %v992
    %v1057 = vmul.f32 %v929, %v993
    %v1058 = vmul.f32 %v930, %v994
    %v1059 = vmul.f32 %v931, %v995
    %v1060 = vmul.f32 %v932, %v996
    %v1061 = vmul.f32 %v933, %v997
    %v1062 = vmul.f32 %v934, %v998
    %v1063 = vmul.f32 %v935, %v999
    %v1064 = vmul.f32 %v1000, -1.0
    %v1065 = vmul.f32 %v1001, -1.0
    %v1066 = vmul.f32 %v1002, -1.0
    %v1067 = vmul.f32 %v1003, -1.0
    %v1068 = vmul.f32 %v1004, -1.0
    %v1069 = vmul.f32 %v1005, -1.0
    %v1070 = vmul.f32 %v1006, -1.0
    %v1071 = vmul.f32 %v1007, -1.0
    %v1072 = vmul.f32 %v1008, -1.0
    %v1073 = vmul.f32 %v1009, -1.0
    %v1074 = vmul.f32 %v1010, -1.0
    %v1075 = vmul.f32 %v1011, -1.0
    %v1076 = vmul.f32 %v1012, -1.0
    %v1077 = vmul.f32 %v1013, -1.0
    %v1078 = vmul.f32 %v1014, -1.0
    %v1079 = vmul.f32 %v1015, -1.0
    %v1080 = vmul.f32 %v1016, -1.0
    %v1081 = vmul.f32 %v1017, -1.0
    %v1082 = vmul.f32 %v1018, -1.0
    %v1083 = vmul.f32 %v1019, -1.0
    %v1084 = vmul.f32 %v1020, -1.0
    %v1085 = vmul.f32 %v1021, -1.0
    %v1086 = vmul.f32 %v1022, -1.0
    %v1087 = vmul.f32 %v1023, -1.0
    %v1088 = vmul.f32 %v1024, -1.0
    %v1089 = vmul.f32 %v1025, -1.0
    %v1090 = vmul.f32 %v1026, -1.0
    %v1091 = vmul.f32 %v1027, -1.0
    %v1092 = vmul.f32 %v1028, -1.0
    %v1093 = vmul.f32 %v1029, -1.0
    %v1094 = vmul.f32 %v1030, -1.0
    %v1095 = vmul.f32 %v1031, -1.0
    %v1096 = vmul.f32 %v1032, -1.0
    %v1097 = vmul.f32 %v1033, -1.0
    %v1098 = vmul.f32 %v1034, -1.0
    %v1099 = vmul.f32 %v1035, -1.0
    %v1100 = vmul.f32 %v1036, -1.0
    %v1101 = vmul.f32 %v1037, -1.0
    %v1102 = vmul.f32 %v1038, -1.0
    %v1103 = vmul.f32 %v1039, -1.0
    %v1104 = vmul.f32 %v1040, -1.0
    %v1105 = vmul.f32 %v1041, -1.0
    %v1106 = vmul.f32 %v1042, -1.0
    %v1107 = vmul.f32 %v1043, -1.0
    %v1108 = vmul.f32 %v1044, -1.0
    %v1109 = vmul.f32 %v1045, -1.0
    %v1110 = vmul.f32 %v1046, -1.0
    %v1111 = vmul.f32 %v1047, -1.0
    %v1112 = vmul.f32 %v1048, -1.0
    %v1113 = vmul.f32 %v1049, -1.0
    %v1114 = vmul.f32 %v1050, -1.0
    %v1115 = vmul.f32 %v1051, -1.0
    %v1116 = vmul.f32 %v1052, -1.0
    %v1117 = vmul.f32 %v1053, -1.0
    %v1118 = vmul.f32 %v1054, -1.0
    %v1119 = vmul.f32 %v1055, -1.0
    %v1120 = vmul.f32 %v1056, -1.0
    %v1121 = vmul.f32 %v1057, -1.0
    %v1122 = vmul.f32 %v1058, -1.0
    %v1123 = vmul.f32 %v1059, -1.0
    %v1124 = vmul.f32 %v1060, -1.0
    %v1125 = vmul.f32 %v1061, -1.0
    %v1126 = vmul.f32 %v1062, -1.0
    %v1127 = vmul.f32 %v1063, -1.0
    %1128 = vst [vmem:[#allocation7 + $0x10] sm:$0xff] %v1064
    %1129 = vst [vmem:[#allocation7 + $0x30] sm:$0xff] %v1065
    %1130 = vst [vmem:[#allocation7 + $0x50] sm:$0xff] %v1066
    %1131 = vst [vmem:[#allocation7 + $0x70] sm:$0xff] %v1067
    %1132 = vst [vmem:[#allocation7 + $0x90] sm:$0xff] %v1068
    %1133 = vst [vmem:[#allocation7 + $0xb0] sm:$0xff] %v1069
    %1134 = vst [vmem:[#allocation7 + $0xd0] sm:$0xff] %v1070
    %1135 = vst [vmem:[#allocation7 + $0xf0] sm:$0xff] %v1071
    %1136 = vst [vmem:[#allocation7 + $0x110] sm:$0xff] %v1072
    %1137 = vst [vmem:[#allocation7 + $0x130] sm:$0xff] %v1073
    %1138 = vst [vmem:[#allocation7 + $0x150] sm:$0xff] %v1074
    %1139 = vst [vmem:[#allocation7 + $0x170] sm:$0xff] %v1075
    %1140 = vst [vmem:[#allocation7 + $0x190] sm:$0xff] %v1076
    %1141 = vst [vmem:[#allocation7 + $0x1b0] sm:$0xff] %v1077
    %1142 = vst [vmem:[#allocation7 + $0x1d0] sm:$0xff] %v1078
    %1143 = vst [vmem:[#allocation7 + $0x1f0] sm:$0xff] %v1079
    %1144 = vst [vmem:[#allocation7 + $0x210] sm:$0xff] %v1080
    %1145 = vst [vmem:[#allocation7 + $0x230] sm:$0xff] %v1081
    %1146 = vst [vmem:[#allocation7 + $0x250] sm:$0xff] %v1082
    %1147 = vst [vmem:[#allocation7 + $0x270] sm:$0xff] %v1083
    %1148 = vst [vmem:[#allocation7 + $0x290] sm:$0xff] %v1084
    %1149 = vst [vmem:[#allocation7 + $0x2b0] sm:$0xff] %v1085
    %1150 = vst [vmem:[#allocation7 + $0x2d0] sm:$0xff] %v1086
    %1151 = vst [vmem:[#allocation7 + $0x2f0] sm:$0xff] %v1087
    %1152 = vst [vmem:[#allocation7 + $0x310] sm:$0xff] %v1088
    %1153 = vst [vmem:[#allocation7 + $0x330] sm:$0xff] %v1089
    %1154 = vst [vmem:[#allocation7 + $0x350] sm:$0xff] %v1090
    %1155 = vst [vmem:[#allocation7 + $0x370] sm:$0xff] %v1091
    %1156 = vst [vmem:[#allocation7 + $0x390] sm:$0xff] %v1092
    %1157 = vst [vmem:[#allocation7 + $0x3b0] sm:$0xff] %v1093
    %1158 = vst [vmem:[#allocation7 + $0x3d0] sm:$0xff] %v1094
    %1159 = vst [vmem:[#allocation7 + $0x3f0] sm:$0xff] %v1095
    %1160 = vst [vmem:[#allocation7 + $0x410] sm:$0xff] %v1096
    %1161 = vst [vmem:[#allocation7 + $0x430] sm:$0xff] %v1097
    %1162 = vst [vmem:[#allocation7 + $0x450] sm:$0xff] %v1098
    %1163 = vst [vmem:[#allocation7 + $0x470] sm:$0xff] %v1099
    %1164 = vst [vmem:[#allocation7 + $0x490] sm:$0xff] %v1100
    %1165 = vst [vmem:[#allocation7 + $0x4b0] sm:$0xff] %v1101
    %1166 = vst [vmem:[#allocation7 + $0x4d0] sm:$0xff] %v1102
    %1167 = vst [vmem:[#allocation7 + $0x4f0] sm:$0xff] %v1103
    %1168 = vst [vmem:[#allocation7 + $0x510] sm:$0xff] %v1104
    %1169 = vst [vmem:[#allocation7 + $0x530] sm:$0xff] %v1105
    %1170 = vst [vmem:[#allocation7 + $0x550] sm:$0xff] %v1106
    %1171 = vst [vmem:[#allocation7 + $0x570] sm:$0xff] %v1107
    %1172 = vst [vmem:[#allocation7 + $0x590] sm:$0xff] %v1108
    %1173 = vst [vmem:[#allocation7 + $0x5b0] sm:$0xff] %v1109
    %1174 = vst [vmem:[#allocation7 + $0x5d0] sm:$0xff] %v1110
    %1175 = vst [vmem:[#allocation7 + $0x5f0] sm:$0xff] %v1111
    %1176 = vst [vmem:[#allocation7 + $0x610] sm:$0xff] %v1112
    %1177 = vst [vmem:[#allocation7 + $0x630] sm:$0xff] %v1113
    %1178 = vst [vmem:[#allocation7 + $0x650] sm:$0xff] %v1114
    %1179 = vst [vmem:[#allocation7 + $0x670] sm:$0xff] %v1115
    %1180 = vst [vmem:[#allocation7 + $0x690] sm:$0xff] %v1116
    %1181 = vst [vmem:[#allocation7 + $0x6b0] sm:$0xff] %v1117
    %1182 = vst [vmem:[#allocation7 + $0x6d0] sm:$0xff] %v1118
    %1183 = vst [vmem:[#allocation7 + $0x6f0] sm:$0xff] %v1119
    %1184 = vst [vmem:[#allocation7 + $0x710] sm:$0xff] %v1120
    %1185 = vst [vmem:[#allocation7 + $0x730] sm:$0xff] %v1121
    %1186 = vst [vmem:[#allocation7 + $0x750] sm:$0xff] %v1122
    %1187 = vst [vmem:[#allocation7 + $0x770] sm:$0xff] %v1123
    %1188 = vst [vmem:[#allocation7 + $0x790] sm:$0xff] %v1124
    %1189 = vst [vmem:[#allocation7 + $0x7b0] sm:$0xff] %v1125
    %1190 = vst [vmem:[#allocation7 + $0x7d0] sm:$0xff] %v1126
    %1191 = vst [vmem:[#allocation7 + $0x7f0] sm:$0xff] %v1127
    %v1192 = vld [vmem:[#allocation2 + $0x8] sm:$0xff]
    %v1193 = vld [vmem:[#allocation2 + $0x18] sm:$0xff]
    %v1194 = vld [vmem:[#allocation2 + $0x28] sm:$0xff]
    %v1195 = vld [vmem:[#allocation2 + $0x38] sm:$0xff]
    %v1196 = vld [vmem:[#allocation2 + $0x48] sm:$0xff]
    %v1197 = vld [vmem:[#allocation2 + $0x58] sm:$0xff]
    %v1198 = vld [vmem:[#allocation2 + $0x68] sm:$0xff]
    %v1199 = vld [vmem:[#allocation2 + $0x78] sm:$0xff]
    %v1200 = vld [vmem:[#allocation2 + $0x88] sm:$0xff]
    %v1201 = vld [vmem:[#allocation2 + $0x98] sm:$0xff]
    %v1202 = vld [vmem:[#allocation2 + $0xa8] sm:$0xff]
    %v1203 = vld [vmem:[#allocation2 + $0xb8] sm:$0xff]
    %v1204 = vld [vmem:[#allocation2 + $0xc8] sm:$0xff]
    %v1205 = vld [vmem:[#allocation2 + $0xd8] sm:$0xff]
    %v1206 = vld [vmem:[#allocation2 + $0xe8] sm:$0xff]
    %v1207 = vld [vmem:[#allocation2 + $0xf8] sm:$0xff]
    %v1208 = vld [vmem:[#allocation2 + $0x108] sm:$0xff]
    %v1209 = vld [vmem:[#allocation2 + $0x118] sm:$0xff]
    %v1210 = vld [vmem:[#allocation2 + $0x128] sm:$0xff]
    %v1211 = vld [vmem:[#allocation2 + $0x138] sm:$0xff]
    %v1212 = vld [vmem:[#allocation2 + $0x148] sm:$0xff]
    %v1213 = vld [vmem:[#allocation2 + $0x158] sm:$0xff]
    %v1214 = vld [vmem:[#allocation2 + $0x168] sm:$0xff]
    %v1215 = vld [vmem:[#allocation2 + $0x178] sm:$0xff]
    %v1216 = vld [vmem:[#allocation2 + $0x188] sm:$0xff]
    %v1217 = vld [vmem:[#allocation2 + $0x198] sm:$0xff]
    %v1218 = vld [vmem:[#allocation2 + $0x1a8] sm:$0xff]
    %v1219 = vld [vmem:[#allocation2 + $0x1b8] sm:$0xff]
    %v1220 = vld [vmem:[#allocation2 + $0x1c8] sm:$0xff]
    %v1221 = vld [vmem:[#allocation2 + $0x1d8] sm:$0xff]
    %v1222 = vld [vmem:[#allocation2 + $0x1e8] sm:$0xff]
    %v1223 = vld [vmem:[#allocation2 + $0x1f8] sm:$0xff]
    %v1224 = vld [vmem:[#allocation2 + $0x208] sm:$0xff]
    %v1225 = vld [vmem:[#allocation2 + $0x218] sm:$0xff]
    %v1226 = vld [vmem:[#allocation2 + $0x228] sm:$0xff]
    %v1227 = vld [vmem:[#allocation2 + $0x238] sm:$0xff]
    %v1228 = vld [vmem:[#allocation2 + $0x248] sm:$0xff]
    %v1229 = vld [vmem:[#allocation2 + $0x258] sm:$0xff]
    %v1230 = vld [vmem:[#allocation2 + $0x268] sm:$0xff]
    %v1231 = vld [vmem:[#allocation2 + $0x278] sm:$0xff]
    %v1232 = vld [vmem:[#allocation2 + $0x288] sm:$0xff]
    %v1233 = vld [vmem:[#allocation2 + $0x298] sm:$0xff]
    %v1234 = vld [vmem:[#allocation2 + $0x2a8] sm:$0xff]
    %v1235 = vld [vmem:[#allocation2 + $0x2b8] sm:$0xff]
    %v1236 = vld [vmem:[#allocation2 + $0x2c8] sm:$0xff]
    %v1237 = vld [vmem:[#allocation2 + $0x2d8] sm:$0xff]
    %v1238 = vld [vmem:[#allocation2 + $0x2e8] sm:$0xff]
    %v1239 = vld [vmem:[#allocation2 + $0x2f8] sm:$0xff]
    %v1240 = vld [vmem:[#allocation2 + $0x308] sm:$0xff]
    %v1241 = vld [vmem:[#allocation2 + $0x318] sm:$0xff]
    %v1242 = vld [vmem:[#allocation2 + $0x328] sm:$0xff]
    %v1243 = vld [vmem:[#allocation2 + $0x338] sm:$0xff]
    %v1244 = vld [vmem:[#allocation2 + $0x348] sm:$0xff]
    %v1245 = vld [vmem:[#allocation2 + $0x358] sm:$0xff]
    %v1246 = vld [vmem:[#allocation2 + $0x368] sm:$0xff]
    %v1247 = vld [vmem:[#allocation2 + $0x378] sm:$0xff]
    %v1248 = vld [vmem:[#allocation2 + $0x388] sm:$0xff]
    %v1249 = vld [vmem:[#allocation2 + $0x398] sm:$0xff]
    %v1250 = vld [vmem:[#allocation2 + $0x3a8] sm:$0xff]
    %v1251 = vld [vmem:[#allocation2 + $0x3b8] sm:$0xff]
    %v1252 = vld [vmem:[#allocation2 + $0x3c8] sm:$0xff]
    %v1253 = vld [vmem:[#allocation2 + $0x3d8] sm:$0xff]
    %v1254 = vld [vmem:[#allocation2 + $0x3e8] sm:$0xff]
    %v1255 = vld [vmem:[#allocation2 + $0x3f8] sm:$0xff]
    %v1256 = vld [vmem:[#allocation5] sm:$0xff]
    %v1257 = vld [vmem:[#allocation5 + $0x18] sm:$0xff]
    %v1258 = vld [vmem:[#allocation5 + $0x30] sm:$0xff]
    %v1259 = vld [vmem:[#allocation5 + $0x48] sm:$0xff]
    %v1260 = vld [vmem:[#allocation5 + $0x60] sm:$0xff]
    %v1261 = vld [vmem:[#allocation5 + $0x78] sm:$0xff]
    %v1262 = vld [vmem:[#allocation5 + $0x90] sm:$0xff]
    %v1263 = vld [vmem:[#allocation5 + $0xa8] sm:$0xff]
    %v1264 = vld [vmem:[#allocation5 + $0xc0] sm:$0xff]
    %v1265 = vld [vmem:[#allocation5 + $0xd8] sm:$0xff]
    %v1266 = vld [vmem:[#allocation5 + $0xf0] sm:$0xff]
    %v1267 = vld [vmem:[#allocation5 + $0x108] sm:$0xff]
    %v1268 = vld [vmem:[#allocation5 + $0x120] sm:$0xff]
    %v1269 = vld [vmem:[#allocation5 + $0x138] sm:$0xff]
    %v1270 = vld [vmem:[#allocation5 + $0x150] sm:$0xff]
    %v1271 = vld [vmem:[#allocation5 + $0x168] sm:$0xff]
    %v1272 = vld [vmem:[#allocation5 + $0x180] sm:$0xff]
    %v1273 = vld [vmem:[#allocation5 + $0x198] sm:$0xff]
    %v1274 = vld [vmem:[#allocation5 + $0x1b0] sm:$0xff]
    %v1275 = vld [vmem:[#allocation5 + $0x1c8] sm:$0xff]
    %v1276 = vld [vmem:[#allocation5 + $0x1e0] sm:$0xff]
    %v1277 = vld [vmem:[#allocation5 + $0x1f8] sm:$0xff]
    %v1278 = vld [vmem:[#allocation5 + $0x210] sm:$0xff]
    %v1279 = vld [vmem:[#allocation5 + $0x228] sm:$0xff]
    %v1280 = vld [vmem:[#allocation5 + $0x240] sm:$0xff]
    %v1281 = vld [vmem:[#allocation5 + $0x258] sm:$0xff]
    %v1282 = vld [vmem:[#allocation5 + $0x270] sm:$0xff]
    %v1283 = vld [vmem:[#allocation5 + $0x288] sm:$0xff]
    %v1284 = vld [vmem:[#allocation5 + $0x2a0] sm:$0xff]
    %v1285 = vld [vmem:[#allocation5 + $0x2b8] sm:$0xff]
    %v1286 = vld [vmem:[#allocation5 + $0x2d0] sm:$0xff]
    %v1287 = vld [vmem:[#allocation5 + $0x2e8] sm:$0xff]
    %v1288 = vld [vmem:[#allocation5 + $0x300] sm:$0xff]
    %v1289 = vld [vmem:[#allocation5 + $0x318] sm:$0xff]
    %v1290 = vld [vmem:[#allocation5 + $0x330] sm:$0xff]
    %v1291 = vld [vmem:[#allocation5 + $0x348] sm:$0xff]
    %v1292 = vld [vmem:[#allocation5 + $0x360] sm:$0xff]
    %v1293 = vld [vmem:[#allocation5 + $0x378] sm:$0xff]
    %v1294 = vld [vmem:[#allocation5 + $0x390] sm:$0xff]
    %v1295 = vld [vmem:[#allocation5 + $0x3a8] sm:$0xff]
    %v1296 = vld [vmem:[#allocation5 + $0x3c0] sm:$0xff]
    %v1297 = vld [vmem:[#allocation5 + $0x3d8] sm:$0xff]
    %v1298 = vld [vmem:[#allocation5 + $0x3f0] sm:$0xff]
    %v1299 = vld [vmem:[#allocation5 + $0x408] sm:$0xff]
    %v1300 = vld [vmem:[#allocation5 + $0x420] sm:$0xff]
    %v1301 = vld [vmem:[#allocation5 + $0x438] sm:$0xff]
    %v1302 = vld [vmem:[#allocation5 + $0x450] sm:$0xff]
    %v1303 = vld [vmem:[#allocation5 + $0x468] sm:$0xff]
    %v1304 = vld [vmem:[#allocation5 + $0x480] sm:$0xff]
    %v1305 = vld [vmem:[#allocation5 + $0x498] sm:$0xff]
    %v1306 = vld [vmem:[#allocation5 + $0x4b0] sm:$0xff]
    %v1307 = vld [vmem:[#allocation5 + $0x4c8] sm:$0xff]
    %v1308 = vld [vmem:[#allocation5 + $0x4e0] sm:$0xff]
    %v1309 = vld [vmem:[#allocation5 + $0x4f8] sm:$0xff]
    %v1310 = vld [vmem:[#allocation5 + $0x510] sm:$0xff]
    %v1311 = vld [vmem:[#allocation5 + $0x528] sm:$0xff]
    %v1312 = vld [vmem:[#allocation5 + $0x540] sm:$0xff]
    %v1313 = vld [vmem:[#allocation5 + $0x558] sm:$0xff]
    %v1314 = vld [vmem:[#allocation5 + $0x570] sm:$0xff]
    %v1315 = vld [vmem:[#allocation5 + $0x588] sm:$0xff]
    %v1316 = vld [vmem:[#allocation5 + $0x5a0] sm:$0xff]
    %v1317 = vld [vmem:[#allocation5 + $0x5b8] sm:$0xff]
    %v1318 = vld [vmem:[#allocation5 + $0x5d0] sm:$0xff]
    %v1319 = vld [vmem:[#allocation5 + $0x5e8] sm:$0xff]
    %v1320 = vmul.f32 %v1192, %v1256
    %v1321 = vmul.f32 %v1193, %v1257
    %v1322 = vmul.f32 %v1194, %v1258
    %v1323 = vmul.f32 %v1195, %v1259
    %v1324 = vmul.f32 %v1196, %v1260
    %v1325 = vmul.f32 %v1197, %v1261
    %v1326 = vmul.f32 %v1198, %v1262
    %v1327 = vmul.f32 %v1199, %v1263
    %v1328 = vmul.f32 %v1200, %v1264
    %v1329 = vmul.f32 %v1201, %v1265
    %v1330 = vmul.f32 %v1202, %v1266
    %v1331 = vmul.f32 %v1203, %v1267
    %v1332 = vmul.f32 %v1204, %v1268
    %v1333 = vmul.f32 %v1205, %v1269
    %v1334 = vmul.f32 %v1206, %v1270
    %v1335 = vmul.f32 %v1207, %v1271
    %v1336 = vmul.f32 %v1208, %v1272
    %v1337 = vmul.f32 %v1209, %v1273
    %v1338 = vmul.f32 %v1210, %v1274
    %v1339 = vmul.f32 %v1211, %v1275
    %v1340 = vmul.f32 %v1212, %v1276
    %v1341 = vmul.f32 %v1213, %v1277
    %v1342 = vmul.f32 %v1214, %v1278
    %v1343 = vmul.f32 %v1215, %v1279
    %v1344 = vmul.f32 %v1216, %v1280
    %v1345 = vmul.f32 %v1217, %v1281
    %v1346 = vmul.f32 %v1218, %v1282
    %v1347 = vmul.f32 %v1219, %v1283
    %v1348 = vmul.f32 %v1220, %v1284
    %v1349 = vmul.f32 %v1221, %v1285
    %v1350 = vmul.f32 %v1222, %v1286
    %v1351 = vmul.f32 %v1223, %v1287
    %v1352 = vmul.f32 %v1224, %v1288
    %v1353 = vmul.f32 %v1225, %v1289
    %v1354 = vmul.f32 %v1226, %v1290
    %v1355 = vmul.f32 %v1227, %v1291
    %v1356 = vmul.f32 %v1228, %v1292
    %v1357 = vmul.f32 %v1229, %v1293
    %v1358 = vmul.f32 %v1230, %v1294
    %v1359 = vmul.f32 %v1231, %v1295
    %v1360 = vmul.f32 %v1232, %v1296
    %v1361 = vmul.f32 %v1233, %v1297
    %v1362 = vmul.f32 %v1234, %v1298
    %v1363 = vmul.f32 %v1235, %v1299
    %v1364 = vmul.f32 %v1236, %v1300
    %v1365 = vmul.f32 %v1237, %v1301
    %v1366 = vmul.f32 %v1238, %v1302
    %v1367 = vmul.f32 %v1239, %v1303
    %v1368 = vmul.f32 %v1240, %v1304
    %v1369 = vmul.f32 %v1241, %v1305
    %v1370 = vmul.f32 %v1242, %v1306
    %v1371 = vmul.f32 %v1243, %v1307
    %v1372 = vmul.f32 %v1244, %v1308
    %v1373 = vmul.f32 %v1245, %v1309
    %v1374 = vmul.f32 %v1246, %v1310
    %v1375 = vmul.f32 %v1247, %v1311
    %v1376 = vmul.f32 %v1248, %v1312
    %v1377 = vmul.f32 %v1249, %v1313
    %v1378 = vmul.f32 %v1250, %v1314
    %v1379 = vmul.f32 %v1251, %v1315
    %v1380 = vmul.f32 %v1252, %v1316
    %v1381 = vmul.f32 %v1253, %v1317
    %v1382 = vmul.f32 %v1254, %v1318
    %v1383 = vmul.f32 %v1255, %v1319
    %v1384 = vmul.f32 %v1320, 2.0
    %v1385 = vmul.f32 %v1321, 2.0
    %v1386 = vmul.f32 %v1322, 2.0
    %v1387 = vmul.f32 %v1323, 2.0
    %v1388 = vmul.f32 %v1324, 2.0
    %v1389 = vmul.f32 %v1325, 2.0
    %v1390 = vmul.f32 %v1326, 2.0
    %v1391 = vmul.f32 %v1327, 2.0
    %v1392 = vmul.f32 %v1328, 2.0
    %v1393 = vmul.f32 %v1329, 2.0
    %v1394 = vmul.f32 %v1330, 2.0
    %v1395 = vmul.f32 %v1331, 2.0
    %v1396 = vmul.f32 %v1332, 2.0
    %v1397 = vmul.f32 %v1333, 2.0
    %v1398 = vmul.f32 %v1334, 2.0
    %v1399 = vmul.f32 %v1335, 2.0
    %v1400 = vmul.f32 %v1336, 2.0
    %v1401 = vmul.f32 %v1337, 2.0
    %v1402 = vmul.f32 %v1338, 2.0
    %v1403 = vmul.f32 %v1339, 2.0
    %v1404 = vmul.f32 %v1340, 2.0
    %v1405 = vmul.f32 %v1341, 2.0
    %v1406 = vmul.f32 %v1342, 2.0
    %v1407 = vmul.f32 %v1343, 2.0
    %v1408 = vmul.f32 %v1344, 2.0
    %v1409 = vmul.f32 %v1345, 2.0
    %v1410 = vmul.f32 %v1346, 2.0
    %v1411 = vmul.f32 %v1347, 2.0
    %v1412 = vmul.f32 %v1348, 2.0
    %v1413 = vmul.f32 %v1349, 2.0
    %v1414 = vmul.f32 %v1350, 2.0
    %v1415 = vmul.f32 %v1351, 2.0
    %v1416 = vmul.f32 %v1352, 2.0
    %v1417 = vmul.f32 %v1353, 2.0
    %v1418 = vmul.f32 %v1354, 2.0
    %v1419 = vmul.f32 %v1355, 2.0
    %v1420 = vmul.f32 %v1356, 2.0
    %v1421 = vmul.f32 %v1357, 2.0
    %v1422 = vmul.f32 %v1358, 2.0
    %v1423 = vmul.f32 %v1359, 2.0
    %v1424 = vmul.f32 %v1360, 2.0
    %v1425 = vmul.f32 %v1361, 2.0
    %v1426 = vmul.f32 %v1362, 2.0
    %v1427 = vmul.f32 %v1363, 2.0
    %v1428 = vmul.f32 %v1364, 2.0
    %v1429 = vmul.f32 %v1365, 2.0
    %v1430 = vmul.f32 %v1366, 2.0
    %v1431 = vmul.f32 %v1367, 2.0
    %v1432 = vmul.f32 %v1368, 2.0
    %v1433 = vmul.f32 %v1369, 2.0
    %v1434 = vmul.f32 %v1370, 2.0
    %v1435 = vmul.f32 %v1371, 2.0
    %v1436 = vmul.f32 %v1372, 2.0
    %v1437 = vmul.f32 %v1373, 2.0
    %v1438 = vmul.f32 %v1374, 2.0
    %v1439 = vmul.f32 %v1375, 2.0
    %v1440 = vmul.f32 %v1376, 2.0
    %v1441 = vmul.f32 %v1377, 2.0
    %v1442 = vmul.f32 %v1378, 2.0
    %v1443 = vmul.f32 %v1379, 2.0
    %v1444 = vmul.f32 %v1380, 2.0
    %v1445 = vmul.f32 %v1381, 2.0
    %v1446 = vmul.f32 %v1382, 2.0
    %v1447 = vmul.f32 %v1383, 2.0
    %v1448 = vld [vmem:[#allocation5 + $0x10] sm:$0xff]
    %v1449 = vld [vmem:[#allocation5 + $0x28] sm:$0xff]
    %v1450 = vld [vmem:[#allocation5 + $0x40] sm:$0xff]
    %v1451 = vld [vmem:[#allocation5 + $0x58] sm:$0xff]
    %v1452 = vld [vmem:[#allocation5 + $0x70] sm:$0xff]
    %v1453 = vld [vmem:[#allocation5 + $0x88] sm:$0xff]
    %v1454 = vld [vmem:[#allocation5 + $0xa0] sm:$0xff]
    %v1455 = vld [vmem:[#allocation5 + $0xb8] sm:$0xff]
    %v1456 = vld [vmem:[#allocation5 + $0xd0] sm:$0xff]
    %v1457 = vld [vmem:[#allocation5 + $0xe8] sm:$0xff]
    %v1458 = vld [vmem:[#allocation5 + $0x100] sm:$0xff]
    %v1459 = vld [vmem:[#allocation5 + $0x118] sm:$0xff]
    %v1460 = vld [vmem:[#allocation5 + $0x130] sm:$0xff]
    %v1461 = vld [vmem:[#allocation5 + $0x148] sm:$0xff]
    %v1462 = vld [vmem:[#allocation5 + $0x160] sm:$0xff]
    %v1463 = vld [vmem:[#allocation5 + $0x178] sm:$0xff]
    %v1464 = vld [vmem:[#allocation5 + $0x190] sm:$0xff]
    %v1465 = vld [vmem:[#allocation5 + $0x1a8] sm:$0xff]
    %v1466 = vld [vmem:[#allocation5 + $0x1c0] sm:$0xff]
    %v1467 = vld [vmem:[#allocation5 + $0x1d8] sm:$0xff]
    %v1468 = vld [vmem:[#allocation5 + $0x1f0] sm:$0xff]
    %v1469 = vld [vmem:[#allocation5 + $0x208] sm:$0xff]
    %v1470 = vld [vmem:[#allocation5 + $0x220] sm:$0xff]
    %v1471 = vld [vmem:[#allocation5 + $0x238] sm:$0xff]
    %v1472 = vld [vmem:[#allocation5 + $0x250] sm:$0xff]
    %v1473 = vld [vmem:[#allocation5 + $0x268] sm:$0xff]
    %v1474 = vld [vmem:[#allocation5 + $0x280] sm:$0xff]
    %v1475 = vld [vmem:[#allocation5 + $0x298] sm:$0xff]
    %v1476 = vld [vmem:[#allocation5 + $0x2b0] sm:$0xff]
    %v1477 = vld [vmem:[#allocation5 + $0x2c8] sm:$0xff]
    %v1478 = vld [vmem:[#allocation5 + $0x2e0] sm:$0xff]
    %v1479 = vld [vmem:[#allocation5 + $0x2f8] sm:$0xff]
    %v1480 = vld [vmem:[#allocation5 + $0x310] sm:$0xff]
    %v1481 = vld [vmem:[#allocation5 + $0x328] sm:$0xff]
    %v1482 = vld [vmem:[#allocation5 + $0x340] sm:$0xff]
    %v1483 = vld [vmem:[#allocation5 + $0x358] sm:$0xff]
    %v1484 = vld [vmem:[#allocation5 + $0x370] sm:$0xff]
    %v1485 = vld [vmem:[#allocation5 + $0x388] sm:$0xff]
    %v1486 = vld [vmem:[#allocation5 + $0x3a0] sm:$0xff]
    %v1487 = vld [vmem:[#allocation5 + $0x3b8] sm:$0xff]
    %v1488 = vld [vmem:[#allocation5 + $0x3d0] sm:$0xff]
    %v1489 = vld [vmem:[#allocation5 + $0x3e8] sm:$0xff]
    %v1490 = vld [vmem:[#allocation5 + $0x400] sm:$0xff]
    %v1491 = vld [vmem:[#allocation5 + $0x418] sm:$0xff]
    %v1492 = vld [vmem:[#allocation5 + $0x430] sm:$0xff]
    %v1493 = vld [vmem:[#allocation5 + $0x448] sm:$0xff]
    %v1494 = vld [vmem:[#allocation5 + $0x460] sm:$0xff]
    %v1495 = vld [vmem:[#allocation5 + $0x478] sm:$0xff]
    %v1496 = vld [vmem:[#allocation5 + $0x490] sm:$0xff]
    %v1497 = vld [vmem:[#allocation5 + $0x4a8] sm:$0xff]
    %v1498 = vld [vmem:[#allocation5 + $0x4c0] sm:$0xff]
    %v1499 = vld [vmem:[#allocation5 + $0x4d8] sm:$0xff]
    %v1500 = vld [vmem:[#allocation5 + $0x4f0] sm:$0xff]
    %v1501 = vld [vmem:[#allocation5 + $0x508] sm:$0xff]
    %v1502 = vld [vmem:[#allocation5 + $0x520] sm:$0xff]
    %v1503 = vld [vmem:[#allocation5 + $0x538] sm:$0xff]
    %v1504 = vld [vmem:[#allocation5 + $0x550] sm:$0xff]
    %v1505 = vld [vmem:[#allocation5 + $0x568] sm:$0xff]
    %v1506 = vld [vmem:[#allocation5 + $0x580] sm:$0xff]
    %v1507 = vld [vmem:[#allocation5 + $0x598] sm:$0xff]
    %v1508 = vld [vmem:[#allocation5 + $0x5b0] sm:$0xff]
    %v1509 = vld [vmem:[#allocation5 + $0x5c8] sm:$0xff]
    %v1510 = vld [vmem:[#allocation5 + $0x5e0] sm:$0xff]
    %v1511 = vld [vmem:[#allocation5 + $0x5f8] sm:$0xff]
    %v1512 = vmul.f32 %v1192, %v1448
    %v1513 = vmul.f32 %v1193, %v1449
    %v1514 = vmul.f32 %v1194, %v1450
    %v1515 = vmul.f32 %v1195, %v1451
    %v1516 = vmul.f32 %v1196, %v1452
    %v1517 = vmul.f32 %v1197, %v1453
    %v1518 = vmul.f32 %v1198, %v1454
    %v1519 = vmul.f32 %v1199, %v1455
    %v1520 = vmul.f32 %v1200, %v1456
    %v1521 = vmul.f32 %v1201, %v1457
    %v1522 = vmul.f32 %v1202, %v1458
    %v1523 = vmul.f32 %v1203, %v1459
    %v1524 = vmul.f32 %v1204, %v1460
    %v1525 = vmul.f32 %v1205, %v1461
    %v1526 = vmul.f32 %v1206, %v1462
    %v1527 = vmul.f32 %v1207, %v1463
    %v1528 = vmul.f32 %v1208, %v1464
    %v1529 = vmul.f32 %v1209, %v1465
    %v1530 = vmul.f32 %v1210, %v1466
    %v1531 = vmul.f32 %v1211, %v1467
    %v1532 = vmul.f32 %v1212, %v1468
    %v1533 = vmul.f32 %v1213, %v1469
    %v1534 = vmul.f32 %v1214, %v1470
    %v1535 = vmul.f32 %v1215, %v1471
    %v1536 = vmul.f32 %v1216, %v1472
    %v1537 = vmul.f32 %v1217, %v1473
    %v1538 = vmul.f32 %v1218, %v1474
    %v1539 = vmul.f32 %v1219, %v1475
    %v1540 = vmul.f32 %v1220, %v1476
    %v1541 = vmul.f32 %v1221, %v1477
    %v1542 = vmul.f32 %v1222, %v1478
    %v1543 = vmul.f32 %v1223, %v1479
    %v1544 = vmul.f32 %v1224, %v1480
    %v1545 = vmul.f32 %v1225, %v1481
    %v1546 = vmul.f32 %v1226, %v1482
    %v1547 = vmul.f32 %v1227, %v1483
    %v1548 = vmul.f32 %v1228, %v1484
    %v1549 = vmul.f32 %v1229, %v1485
    %v1550 = vmul.f32 %v1230, %v1486
    %v1551 = vmul.f32 %v1231, %v1487
    %v1552 = vmul.f32 %v1232, %v1488
    %v1553 = vmul.f32 %v1233, %v1489
    %v1554 = vmul.f32 %v1234, %v1490
    %v1555 = vmul.f32 %v1235, %v1491
    %v1556 = vmul.f32 %v1236, %v1492
    %v1557 = vmul.f32 %v1237, %v1493
    %v1558 = vmul.f32 %v1238, %v1494
    %v1559 = vmul.f32 %v1239, %v1495
    %v1560 = vmul.f32 %v1240, %v1496
    %v1561 = vmul.f32 %v1241, %v1497
    %v1562 = vmul.f32 %v1242, %v1498
    %v1563 = vmul.f32 %v1243, %v1499
    %v1564 = vmul.f32 %v1244, %v1500
    %v1565 = vmul.f32 %v1245, %v1501
    %v1566 = vmul.f32 %v1246, %v1502
    %v1567 = vmul.f32 %v1247, %v1503
    %v1568 = vmul.f32 %v1248, %v1504
    %v1569 = vmul.f32 %v1249, %v1505
    %v1570 = vmul.f32 %v1250, %v1506
    %v1571 = vmul.f32 %v1251, %v1507
    %v1572 = vmul.f32 %v1252, %v1508
    %v1573 = vmul.f32 %v1253, %v1509
    %v1574 = vmul.f32 %v1254, %v1510
    %v1575 = vmul.f32 %v1255, %v1511
    %v1576 = vmul.f32 %v1512, -0.7
    %v1577 = vmul.f32 %v1513, -0.7
    %v1578 = vmul.f32 %v1514, -0.7
    %v1579 = vmul.f32 %v1515, -0.7
    %v1580 = vmul.f32 %v1516, -0.7
    %v1581 = vmul.f32 %v1517, -0.7
    %v1582 = vmul.f32 %v1518, -0.7
    %v1583 = vmul.f32 %v1519, -0.7
    %v1584 = vmul.f32 %v1520, -0.7
    %v1585 = vmul.f32 %v1521, -0.7
    %v1586 = vmul.f32 %v1522, -0.7
    %v1587 = vmul.f32 %v1523, -0.7
    %v1588 = vmul.f32 %v1524, -0.7
    %v1589 = vmul.f32 %v1525, -0.7
    %v1590 = vmul.f32 %v1526, -0.7
    %v1591 = vmul.f32 %v1527, -0.7
    %v1592 = vmul.f32 %v1528, -0.7
    %v1593 = vmul.f32 %v1529, -0.7
    %v1594 = vmul.f32 %v1530, -0.7
    %v1595 = vmul.f32 %v1531, -0.7
    %v1596 = vmul.f32 %v1532, -0.7
    %v1597 = vmul.f32 %v1533, -0.7
    %v1598 = vmul.f32 %v1534, -0.7
    %v1599 = vmul.f32 %v1535, -0.7
    %v1600 = vmul.f32 %v1536, -0.7
    %v1601 = vmul.f32 %v1537, -0.7
    %v1602 = vmul.f32 %v1538, -0.7
    %v1603 = vmul.f32 %v1539, -0.7
    %v1604 = vmul.f32 %v1540, -0.7
    %v1605 = vmul.f32 %v1541, -0.7
    %v1606 = vmul.f32 %v1542, -0.7
    %v1607 = vmul.f32 %v1543, -0.7
    %v1608 = vmul.f32 %v1544, -0.7
    %v1609 = vmul.f32 %v1545, -0.7
    %v1610 = vmul.f32 %v1546, -0.7
    %v1611 = vmul.f32 %v1547, -0.7
    %v1612 = vmul.f32 %v1548, -0.7
    %v1613 = vmul.f32 %v1549, -0.7
    %v1614 = vmul.f32 %v1550, -0.7
    %v1615 = vmul.f32 %v1551, -0.7
    %v1616 = vmul.f32 %v1552, -0.7
    %v1617 = vmul.f32 %v1553, -0.7
    %v1618 = vmul.f32 %v1554, -0.7
    %v1619 = vmul.f32 %v1555, -0.7
    %v1620 = vmul.f32 %v1556, -0.7
    %v1621 = vmul.f32 %v1557, -0.7
    %v1622 = vmul.f32 %v1558, -0.7
    %v1623 = vmul.f32 %v1559, -0.7
    %v1624 = vmul.f32 %v1560, -0.7
    %v1625 = vmul.f32 %v1561, -0.7
    %v1626 = vmul.f32 %v1562, -0.7
    %v1627 = vmul.f32 %v1563, -0.7
    %v1628 = vmul.f32 %v1564, -0.7
    %v1629 = vmul.f32 %v1565, -0.7
    %v1630 = vmul.f32 %v1566, -0.7
    %v1631 = vmul.f32 %v1567, -0.7
    %v1632 = vmul.f32 %v1568, -0.7
    %v1633 = vmul.f32 %v1569, -0.7
    %v1634 = vmul.f32 %v1570, -0.7
    %v1635 = vmul.f32 %v1571, -0.7
    %v1636 = vmul.f32 %v1572, -0.7
    %v1637 = vmul.f32 %v1573, -0.7
    %v1638 = vmul.f32 %v1574, -0.7
    %v1639 = vmul.f32 %v1575, -0.7
    %v1640 = vadd.f32 %v1384, %v1576
    %v1641 = vadd.f32 %v1385, %v1577
    %v1642 = vadd.f32 %v1386, %v1578
    %v1643 = vadd.f32 %v1387, %v1579
    %v1644 = vadd.f32 %v1388, %v1580
    %v1645 = vadd.f32 %v1389, %v1581
    %v1646 = vadd.f32 %v1390, %v1582
    %v1647 = vadd.f32 %v1391, %v1583
    %v1648 = vadd.f32 %v1392, %v1584
    %v1649 = vadd.f32 %v1393, %v1585
    %v1650 = vadd.f32 %v1394, %v1586
    %v1651 = vadd.f32 %v1395, %v1587
    %v1652 = vadd.f32 %v1396, %v1588
    %v1653 = vadd.f32 %v1397, %v1589
    %v1654 = vadd.f32 %v1398, %v1590
    %v1655 = vadd.f32 %v1399, %v1591
    %v1656 = vadd.f32 %v1400, %v1592
    %v1657 = vadd.f32 %v1401, %v1593
    %v1658 = vadd.f32 %v1402, %v1594
    %v1659 = vadd.f32 %v1403, %v1595
    %v1660 = vadd.f32 %v1404, %v1596
    %v1661 = vadd.f32 %v1405, %v1597
    %v1662 = vadd.f32 %v1406, %v1598
    %v1663 = vadd.f32 %v1407, %v1599
    %v1664 = vadd.f32 %v1408, %v1600
    %v1665 = vadd.f32 %v1409, %v1601
    %v1666 = vadd.f32 %v1410, %v1602
    %v1667 = vadd.f32 %v1411, %v1603
    %v1668 = vadd.f32 %v1412, %v1604
    %v1669 = vadd.f32 %v1413, %v1605
    %v1670 = vadd.f32 %v1414, %v1606
    %v1671 = vadd.f32 %v1415, %v1607
    %v1672 = vadd.f32 %v1416, %v1608
    %v1673 = vadd.f32 %v1417, %v1609
    %v1674 = vadd.f32 %v1418, %v1610
    %v1675 = vadd.f32 %v1419, %v1611
    %v1676 = vadd.f32 %v1420, %v1612
    %v1677 = vadd.f32 %v1421, %v1613
    %v1678 = vadd.f32 %v1422, %v1614
    %v1679 = vadd.f32 %v1423, %v1615
    %v1680 = vadd.f32 %v1424, %v1616
    %v1681 = vadd.f32 %v1425, %v1617
    %v1682 = vadd.f32 %v1426, %v1618
    %v1683 = vadd.f32 %v1427, %v1619
    %v1684 = vadd.f32 %v1428, %v1620
    %v1685 = vadd.f32 %v1429, %v1621
    %v1686 = vadd.f32 %v1430, %v1622
    %v1687 = vadd.f32 %v1431, %v1623
    %v1688 = vadd.f32 %v1432, %v1624
    %v1689 = vadd.f32 %v1433, %v1625
    %v1690 = vadd.f32 %v1434, %v1626
    %v1691 = vadd.f32 %v1435, %v1627
    %v1692 = vadd.f32 %v1436, %v1628
    %v1693 = vadd.f32 %v1437, %v1629
    %v1694 = vadd.f32 %v1438, %v1630
    %v1695 = vadd.f32 %v1439, %v1631
    %v1696 = vadd.f32 %v1440, %v1632
    %v1697 = vadd.f32 %v1441, %v1633
    %v1698 = vadd.f32 %v1442, %v1634
    %v1699 = vadd.f32 %v1443, %v1635
    %v1700 = vadd.f32 %v1444, %v1636
    %v1701 = vadd.f32 %v1445, %v1637
    %v1702 = vadd.f32 %v1446, %v1638
    %v1703 = vadd.f32 %v1447, %v1639
    %1704 = vst [vmem:[#allocation7 + $0x18] sm:$0xff] %v1640
    %1705 = vst [vmem:[#allocation7 + $0x38] sm:$0xff] %v1641
    %1706 = vst [vmem:[#allocation7 + $0x58] sm:$0xff] %v1642
    %1707 = vst [vmem:[#allocation7 + $0x78] sm:$0xff] %v1643
    %1708 = vst [vmem:[#allocation7 + $0x98] sm:$0xff] %v1644
    %1709 = vst [vmem:[#allocation7 + $0xb8] sm:$0xff] %v1645
    %1710 = vst [vmem:[#allocation7 + $0xd8] sm:$0xff] %v1646
    %1711 = vst [vmem:[#allocation7 + $0xf8] sm:$0xff] %v1647
    %1712 = vst [vmem:[#allocation7 + $0x118] sm:$0xff] %v1648
    %1713 = vst [vmem:[#allocation7 + $0x138] sm:$0xff] %v1649
    %1714 = vst [vmem:[#allocation7 + $0x158] sm:$0xff] %v1650
    %1715 = vst [vmem:[#allocation7 + $0x178] sm:$0xff] %v1651
    %1716 = vst [vmem:[#allocation7 + $0x198] sm:$0xff] %v1652
    %1717 = vst [vmem:[#allocation7 + $0x1b8] sm:$0xff] %v1653
    %1718 = vst [vmem:[#allocation7 + $0x1d8] sm:$0xff] %v1654
    %1719 = vst [vmem:[#allocation7 + $0x1f8] sm:$0xff] %v1655
    %1720 = vst [vmem:[#allocation7 + $0x218] sm:$0xff] %v1656
    %1721 = vst [vmem:[#allocation7 + $0x238] sm:$0xff] %v1657
    %1722 = vst [vmem:[#allocation7 + $0x258] sm:$0xff] %v1658
    %1723 = vst [vmem:[#allocation7 + $0x278] sm:$0xff] %v1659
    %1724 = vst [vmem:[#allocation7 + $0x298] sm:$0xff] %v1660
    %1725 = vst [vmem:[#allocation7 + $0x2b8] sm:$0xff] %v1661
    %1726 = vst [vmem:[#allocation7 + $0x2d8] sm:$0xff] %v1662
    %1727 = vst [vmem:[#allocation7 + $0x2f8] sm:$0xff] %v1663
    %1728 = vst [vmem:[#allocation7 + $0x318] sm:$0xff] %v1664
    %1729 = vst [vmem:[#allocation7 + $0x338] sm:$0xff] %v1665
    %1730 = vst [vmem:[#allocation7 + $0x358] sm:$0xff] %v1666
    %1731 = vst [vmem:[#allocation7 + $0x378] sm:$0xff] %v1667
    %1732 = vst [vmem:[#allocation7 + $0x398] sm:$0xff] %v1668
    %1733 = vst [vmem:[#allocation7 + $0x3b8] sm:$0xff] %v1669
    %1734 = vst [vmem:[#allocation7 + $0x3d8] sm:$0xff] %v1670
    %1735 = vst [vmem:[#allocation7 + $0x3f8] sm:$0xff] %v1671
    %1736 = vst [vmem:[#allocation7 + $0x418] sm:$0xff] %v1672
    %1737 = vst [vmem:[#allocation7 + $0x438] sm:$0xff] %v1673
    %1738 = vst [vmem:[#allocation7 + $0x458] sm:$0xff] %v1674
    %1739 = vst [vmem:[#allocation7 + $0x478] sm:$0xff] %v1675
    %1740 = vst [vmem:[#allocation7 + $0x498] sm:$0xff] %v1676
    %1741 = vst [vmem:[#allocation7 + $0x4b8] sm:$0xff] %v1677
    %1742 = vst [vmem:[#allocation7 + $0x4d8] sm:$0xff] %v1678
    %1743 = vst [vmem:[#allocation7 + $0x4f8] sm:$0xff] %v1679
    %1744 = vst [vmem:[#allocation7 + $0x518] sm:$0xff] %v1680
    %1745 = vst [vmem:[#allocation7 + $0x538] sm:$0xff] %v1681
    %1746 = vst [vmem:[#allocation7 + $0x558] sm:$0xff] %v1682
    %1747 = vst [vmem:[#allocation7 + $0x578] sm:$0xff] %v1683
    %1748 = vst [vmem:[#allocation7 + $0x598] sm:$0xff] %v1684
    %1749 = vst [vmem:[#allocation7 + $0x5b8] sm:$0xff] %v1685
    %1750 = vst [vmem:[#allocation7 + $0x5d8] sm:$0xff] %v1686
    %1751 = vst [vmem:[#allocation7 + $0x5f8] sm:$0xff] %v1687
    %1752 = vst [vmem:[#allocation7 + $0x618] sm:$0xff] %v1688
    %1753 = vst [vmem:[#allocation7 + $0x638] sm:$0xff] %v1689
    %1754 = vst [vmem:[#allocation7 + $0x658] sm:$0xff] %v1690
    %1755 = vst [vmem:[#allocation7 + $0x678] sm:$0xff] %v1691
    %1756 = vst [vmem:[#allocation7 + $0x698] sm:$0xff] %v1692
    %1757 = vst [vmem:[#allocation7 + $0x6b8] sm:$0xff] %v1693
    %1758 = vst [vmem:[#allocation7 + $0x6d8] sm:$0xff] %v1694
    %1759 = vst [vmem:[#allocation7 + $0x6f8] sm:$0xff] %v1695
    %1760 = vst [vmem:[#allocation7 + $0x718] sm:$0xff] %v1696
    %1761 = vst [vmem:[#allocation7 + $0x738] sm:$0xff] %v1697
    %1762 = vst [vmem:[#allocation7 + $0x758] sm:$0xff] %v1698
    %1763 = vst [vmem:[#allocation7 + $0x778] sm:$0xff] %v1699
    %1764 = vst [vmem:[#allocation7 + $0x798] sm:$0xff] %v1700
    %1765 = vst [vmem:[#allocation7 + $0x7b8] sm:$0xff] %v1701
    %1766 = vst [vmem:[#allocation7 + $0x7d8] sm:$0xff] %v1702
    %1767 = vst [vmem:[#allocation7 + $0x7f8] sm:$0xff] %v1703
    // Predicated region
    $region18: #{tpu_custom_call.1} parent=1 // pred_check
      _
    $region19: #{tpu_custom_call.1} parent=1 // pred_check_branch
      %1769 = sbr.rel (0) target = $region21
    $region20: #{tpu_custom_call.1} parent=1 // pred_region
      %s1771 = ssub.s32 32768, 32768
      %1772 = vsyncadd [#allocation4], %s1771
      %s1773 = sshll.u32 [#allocation7], 4
      %s1774 = int_to_ptr.vmem [resolvable:$true] %s1773
      %1779 = dma.vmem_to_hbm [thread:$0]  %s1774, 32768, %s2, [#allocation4], 512, 512, 32
    $region21: #{tpu_custom_call.1} parent=1 // pred_fallthru
      _
    // Predicated region
    $region22: #{tpu_custom_call.1} parent=1 // pred_check
      _
    $region23: #{tpu_custom_call.1} parent=1 // pred_check_branch
      %1781 = sbr.rel (0) target = $region25
    $region24: #{tpu_custom_call.1} parent=1 // pred_region
      %1782 = dma.done [#allocation4], 32768
    $region25: #{tpu_custom_call.1} parent=1 // pred_fallthru
      _
    %1783 = vsyncpa [#allocation3], 1
    %1784 = vsyncpa [#allocation6], 1
    %1785 = vsyncpa [#allocation4], 1

</llo_original>
